<compile_context>
chip_gen: v6e
topology: v6e:2x2x1
jax: 0.10.0
libtpu: 0.0.40
codegen_flags: <defaults>
</compile_context>

<pallas_src>
import jax
import jax.numpy as jnp
from jax import lax
from jax.experimental import pallas as pl
from jax.experimental.pallas import tpu as pltpu


# ------------------------------ Pallas kernel ------------------------------ #

def _encoder_kernel(a1_ref, p1_ref, q1_ref, b1_ref,
                    p2_ref, q2_ref, b2_ref,
                    p3_ref, q3_ref, b3_ref,
                    wht_ref, bh_ref, eps_ref,
                    enc_ref, mean_ref, logvar_ref):
    """Full encoder forward for one image (grid is over the batch)."""

    def conv_relu(a, p_ref, q_ref, b_ref):
        # Y[j, o*OH+i] = relu( b[o] + sum_kw (P_kw @ a @ Q_kw)[j, o*OH+i] )
        acc = None
        for kw in range(3):
            t = jnp.dot(p_ref[kw], a, preferred_element_type=jnp.float32)
            u = jnp.dot(t, q_ref[kw], preferred_element_type=jnp.float32)
            acc = u if acc is None else acc + u
        return jnp.maximum(acc + b_ref[...], 0.0)

    a = a1_ref[0]                                  # (W, Ci*H)   = (32, 96)
    a = conv_relu(a, p1_ref, q1_ref, b1_ref)       # (16, 2*16)  = (16, 32)
    a = conv_relu(a, p2_ref, q2_ref, b2_ref)       # ( 8, 4* 8)  = ( 8, 32)
    a = conv_relu(a, p3_ref, q3_ref, b3_ref)       # ( 4, 8* 4)  = ( 4, 32)

    # Fused linear heads (flatten permutation folded into wht):
    #   h[0, t] = sum_j a[j, :] @ WHT[j, :, t]
    h = jnp.dot(a[0:1, :], wht_ref[0], preferred_element_type=jnp.float32)
    for j in range(1, a.shape[0]):
        h = h + jnp.dot(a[j:j + 1, :], wht_ref[j],
                        preferred_element_type=jnp.float32)
    h = h + bh_ref[...]                            # (1, 2L)

    latent = mean_ref.shape[-1]
    mean = h[:, :latent]
    logvar = h[:, latent:]
    enc = mean + eps_ref[0] * jnp.exp(logvar * 0.5)   # reparameterize

    mean_ref[0] = mean
    logvar_ref[0] = logvar
    enc_ref[0] = enc


def _full_spec(arr):
    zeros = (0,) * arr.ndim
    return pl.BlockSpec(arr.shape, lambda n, _z=zeros: _z)


def _batch_spec(shape):
    return pl.BlockSpec((1,) + tuple(shape[1:]), lambda n: (n, 0, 0))


def encoder_pallas(a1, p1, q1, b1, p2, q2, b2, p3, q3, b3, wht, bh, eps3):
    n = a1.shape[0]
    lat = eps3.shape[-1]
    in_specs = [
        _batch_spec(a1.shape),
        _full_spec(p1), _full_spec(q1), _full_spec(b1),
        _full_spec(p2), _full_spec(q2), _full_spec(b2),
        _full_spec(p3), _full_spec(q3), _full_spec(b3),
        _full_spec(wht), _full_spec(bh),
        _batch_spec(eps3.shape),
    ]
    out_spec = pl.BlockSpec((1, 1, lat), lambda i: (i, 0, 0))
    out_shape = tuple(jax.ShapeDtypeStruct((n, 1, lat), jnp.float32)
                      for _ in range(3))
    return pl.pallas_call(
        _encoder_kernel,
        grid=(n,),
        in_specs=in_specs,
        out_specs=(out_spec, out_spec, out_spec),
        out_shape=out_shape,
        compiler_params=pltpu.CompilerParams(
            dimension_semantics=("parallel",)),   # v7x: shard batch over 2 TCs
    )(a1, p1, q1, b1, p2, q2, b2, p3, q3, b3, wht, bh, eps3)


# --------------------- operand construction (JAX glue) ---------------------- #

def build_conv_operands(w, b, hw):
    """Selection / weight operators for one 3x3, stride-2, pad-1 conv.

    Input  activation layout: A[wcol, c*H + h]  = x[c, h, wcol]   (H = W = hw)
    Output activation layout: Y[j,    o*OH + i] = y[o, i, j]      (OH = OW = hw//2)
    with Y = relu( sum_kw P[kw] @ A @ Q[kw] + b_row ).
    """
    co, ci = w.shape[0], w.shape[1]
    ohw = hw // 2
    # P[kw, j, col] = 1  iff  col == 2*j + kw - 1   (OOB col -> all-zero = padding)
    col_wanted = (2 * jnp.arange(ohw)[None, :, None]
                  + jnp.arange(3)[:, None, None] - 1)             # (3, OW, 1)
    p = (jnp.arange(hw)[None, None, :] == col_wanted).astype(jnp.float32)
    # mask[h, i, kh] = 1  iff  h == 2*i + kh - 1
    mask = (jnp.arange(hw)[:, None, None]
            == 2 * jnp.arange(ohw)[None, :, None]
            + jnp.arange(3)[None, None, :] - 1).astype(jnp.float32)
    # Q[kw, c*H + h, o*OH + i] = sum_kh w[o, c, kh, kw] * mask[h, i, kh]
    q = jnp.einsum('ockw,hik->wchoi', w, mask,
                   precision=lax.Precision.HIGHEST
                   ).reshape(3, ci * hw, co * ohw)
    b_row = jnp.repeat(b, ohw).reshape(1, co * ohw)
    return p, q, b_row


def build_head_operands(zm_w, zm_b, lv_w, lv_b):
    """Fold PyTorch NCHW flatten (8,4,4) + both linear heads into one weight."""
    lat = zm_b.shape[0]
    wh = jnp.concatenate([zm_w, lv_w], axis=0)                 # (2L, 128)
    wh4 = wh.reshape(2 * lat, 8, 4, 4)                          # [t, o, i, j]
    wht = jnp.transpose(wh4, (3, 1, 2, 0)).reshape(4, 32, 2 * lat)  # [j, o*4+i, t]
    bh = jnp.concatenate([zm_b, lv_b]).reshape(1, 2 * lat)
    return wht, bh


def encoder_forward(params, x_nchw, eps):
    n, c, h, w = x_nchw.shape
    lat = params["zm_b"].shape[0]
    # Transposed activation layout: A[n, wcol, c*H + h] = x[n, c, h, wcol]
    a1 = jnp.transpose(x_nchw, (0, 3, 1, 2)).reshape(n, w, c * h)
    p1, q1, b1 = build_conv_operands(params["c1_w"], params["c1_b"], h)       # 32
    p2, q2, b2 = build_conv_operands(params["c2_w"], params["c2_b"], h // 2)  # 16
    p3, q3, b3 = build_conv_operands(params["c3_w"], params["c3_b"], h // 4)  # 8
    wht, bh = build_head_operands(params["zm_w"], params["zm_b"],
                                  params["lv_w"], params["lv_b"])
    eps3 = eps.reshape(n, 1, lat)
    enc, z_mean, z_log_var = encoder_pallas(
        a1, p1, q1, b1, p2, q2, b2, p3, q3, b3, wht, bh, eps3)
    return (enc.reshape(n, lat), z_mean.reshape(n, lat),
            z_log_var.reshape(n, lat))


# ------------------------- reference (pure JAX/XLA) -------------------------- #

def encoder_reference(params, x, eps):
    hi = lax.Precision.HIGHEST

    def conv(h, w, b):
        y = lax.conv_general_dilated(
            h, w, window_strides=(2, 2), padding=((1, 1), (1, 1)),
            dimension_numbers=("NCHW", "OIHW", "NCHW"), precision=hi)
        return jax.nn.relu(y + b[None, :, None, None])

    h = conv(x, params["c1_w"], params["c1_b"])
    h = conv(h, params["c2_w"], params["c2_b"])
    h = conv(h, params["c3_w"], params["c3_b"])
    flat = h.reshape(h.shape[0], -1)
    z_mean = jnp.dot(flat, params["zm_w"].T, precision=hi) + params["zm_b"]
    z_log_var = jnp.dot(flat, params["lv_w"].T, precision=hi) + params["lv_b"]
    enc = z_mean + eps * jnp.exp(z_log_var / 2.0)
    return enc, z_mean, z_log_var


# --------------------------- parameter creation ----------------------------- #

def init_encoder_params(key, n_channels, lat_size):
    ks = jax.random.split(key, 5)

    def conv_init(k, co, ci):
        kw_, kb_ = jax.random.split(k)
        bound = 1.0 / (ci * 9) ** 0.5
        w = jax.random.uniform(kw_, (co, ci, 3, 3), jnp.float32, -bound, bound)
        b = jax.random.uniform(kb_, (co,), jnp.float32, -bound, bound)
        return w, b

    def lin_init(k, out_f, in_f):
        kw_, kb_ = jax.random.split(k)
        bound = 1.0 / in_f ** 0.5
        w = jax.random.uniform(kw_, (out_f, in_f), jnp.float32, -bound, bound)
        b = jax.random.uniform(kb_, (out_f,), jnp.float32, -bound, bound)
        return w, b

    c1_w, c1_b = conv_init(ks[0], 2, n_channels)
    c2_w, c2_b = conv_init(ks[1], 4, 2)
    c3_w, c3_b = conv_init(ks[2], 8, 4)
    zm_w, zm_b = lin_init(ks[3], lat_size, 8 * 4 * 4)
    lv_w, lv_b = lin_init(ks[4], lat_size, 8 * 4 * 4)
    return dict(c1_w=c1_w, c1_b=c1_b, c2_w=c2_w, c2_b=c2_b,
                c3_w=c3_w, c3_b=c3_b, zm_w=zm_w, zm_b=zm_b,
                lv_w=lv_w, lv_b=lv_b)


# ---------------------------------- main ------------------------------------ #

if __name__ == "__main__":
    key = jax.random.PRNGKey(0)
    k_param, k_x, k_eps = jax.random.split(key, 3)

    n_channels, lat_size, batch = 3, 16, 2
    params = init_encoder_params(k_param, n_channels, lat_size)

    # 32x32 input required so three stride-2 convs yield 4x4 (module uses 8*4*4)
    x = jax.random.normal(k_x, (batch, n_channels, 32, 32), jnp.float32)
    # eps replaces torch.randn in reparameterize (deterministic here)
    eps = jax.random.normal(k_eps, (batch, lat_size), jnp.float32)

    fwd = jax.jit(encoder_forward)
    encoded, z_mean, z_log_var = fwd(params, x, eps)
    jax.block_until_ready((encoded, z_mean, z_log_var))

    assert encoded.shape == (batch, lat_size)
    assert z_mean.shape == (batch, lat_size)
    assert z_log_var.shape == (batch, lat_size)

    # numerical check against a pure-JAX reference of the PyTorch module
    r_enc, r_mean, r_lv = jax.jit(encoder_reference)(params, x, eps)
    assert jnp.allclose(z_mean, r_mean, atol=1e-2, rtol=1e-2)
    assert jnp.allclose(z_log_var, r_lv, atol=1e-2, rtol=1e-2)
    assert jnp.allclose(encoded, r_enc, atol=1e-2, rtol=1e-2)

    print("KERNEL_OK")
</pallas_src>

<mosaic_0001>
module attributes {stable_mosaic.version = 11 : i64} {
  func.func @_encoder_kernel(%arg0: i32, %arg1: memref<1x32x96xf32, #tpu.memory_space<vmem>>, %arg2: memref<3x16x32xf32, #tpu.memory_space<vmem>>, %arg3: memref<3x96x32xf32, #tpu.memory_space<vmem>>, %arg4: memref<1x32xf32, #tpu.memory_space<vmem>>, %arg5: memref<3x8x16xf32, #tpu.memory_space<vmem>>, %arg6: memref<3x32x32xf32, #tpu.memory_space<vmem>>, %arg7: memref<1x32xf32, #tpu.memory_space<vmem>>, %arg8: memref<3x4x8xf32, #tpu.memory_space<vmem>>, %arg9: memref<3x32x32xf32, #tpu.memory_space<vmem>>, %arg10: memref<1x32xf32, #tpu.memory_space<vmem>>, %arg11: memref<4x32x32xf32, #tpu.memory_space<vmem>>, %arg12: memref<1x32xf32, #tpu.memory_space<vmem>>, %arg13: memref<1x1x16xf32, #tpu.memory_space<vmem>>, %arg14: memref<1x1x16xf32, #tpu.memory_space<vmem>>, %arg15: memref<1x1x16xf32, #tpu.memory_space<vmem>>, %arg16: memref<1x1x16xf32, #tpu.memory_space<vmem>>) attributes {dimension_semantics = [#tpu.dimension_semantics<parallel>], iteration_bounds = array<i64: 2>, scalar_prefetch = 0 : i64, scratch_operands = 0 : i64, tpu.core_type = #tpu.core_type<tc>, window_params = [{transform_indices = @transform_0, window_bounds = array<i64: 1, 32, 96>}, {pipeline_mode = #tpu.pipeline_mode<synchronous>, transform_indices = @transform_1, window_bounds = array<i64: 3, 16, 32>}, {pipeline_mode = #tpu.pipeline_mode<synchronous>, transform_indices = @transform_2, window_bounds = array<i64: 3, 96, 32>}, {pipeline_mode = #tpu.pipeline_mode<synchronous>, transform_indices = @transform_3, window_bounds = array<i64: 1, 32>}, {pipeline_mode = #tpu.pipeline_mode<synchronous>, transform_indices = @transform_4, window_bounds = array<i64: 3, 8, 16>}, {pipeline_mode = #tpu.pipeline_mode<synchronous>, transform_indices = @transform_5, window_bounds = array<i64: 3, 32, 32>}, {pipeline_mode = #tpu.pipeline_mode<synchronous>, transform_indices = @transform_6, window_bounds = array<i64: 1, 32>}, {pipeline_mode = #tpu.pipeline_mode<synchronous>, transform_indices = @transform_7, window_bounds = array<i64: 3, 4, 8>}, {pipeline_mode = #tpu.pipeline_mode<synchronous>, transform_indices = @transform_8, window_bounds = array<i64: 3, 32, 32>}, {pipeline_mode = #tpu.pipeline_mode<synchronous>, transform_indices = @transform_9, window_bounds = array<i64: 1, 32>}, {pipeline_mode = #tpu.pipeline_mode<synchronous>, transform_indices = @transform_10, window_bounds = array<i64: 4, 32, 32>}, {pipeline_mode = #tpu.pipeline_mode<synchronous>, transform_indices = @transform_11, window_bounds = array<i64: 1, 32>}, {transform_indices = @transform_12, window_bounds = array<i64: 1, 1, 16>}, {transform_indices = @transform_13, window_bounds = array<i64: 1, 1, 16>}, {transform_indices = @transform_14, window_bounds = array<i64: 1, 1, 16>}, {transform_indices = @transform_15, window_bounds = array<i64: 1, 1, 16>}]} {
    %c0 = arith.constant 0 : index
    %c0_0 = arith.constant 0 : index
    %c0_1 = arith.constant 0 : index
    %0 = vector.load %arg1[%c0, %c0_0, %c0_1] : memref<1x32x96xf32, #tpu.memory_space<vmem>>, vector<1x32x96xf32>
    %1 = vector.shape_cast %0 : vector<1x32x96xf32> to vector<32x96xf32>
    %c0_2 = arith.constant 0 : index
    %c0_3 = arith.constant 0 : index
    %c0_4 = arith.constant 0 : index
    %2 = vector.load %arg2[%c0_2, %c0_3, %c0_4] : memref<3x16x32xf32, #tpu.memory_space<vmem>>, vector<1x16x32xf32>
    %3 = vector.shape_cast %2 : vector<1x16x32xf32> to vector<16x32xf32>
    %cst = arith.constant dense<0.000000e+00> : vector<16x96xf32>
    %4 = tpu.matmul %3, %1, %cst {dimension_numbers = #tpu.dot_dimension_numbers<[1], [0], [0], [1], [0, 0, 1, 1], [], []>} : vector<16x32xf32>, vector<32x96xf32>, vector<16x96xf32> -> vector<16x96xf32>
    %c0_5 = arith.constant 0 : index
    %c0_6 = arith.constant 0 : index
    %c0_7 = arith.constant 0 : index
    %5 = vector.load %arg3[%c0_5, %c0_6, %c0_7] : memref<3x96x32xf32, #tpu.memory_space<vmem>>, vector<1x96x32xf32>
    %6 = vector.shape_cast %5 : vector<1x96x32xf32> to vector<96x32xf32>
    %cst_8 = arith.constant dense<0.000000e+00> : vector<16x32xf32>
    %7 = tpu.matmul %4, %6, %cst_8 {dimension_numbers = #tpu.dot_dimension_numbers<[1], [0], [0], [1], [0, 0, 1, 1], [], []>} : vector<16x96xf32>, vector<96x32xf32>, vector<16x32xf32> -> vector<16x32xf32>
    %c1 = arith.constant 1 : index
    %c0_9 = arith.constant 0 : index
    %c0_10 = arith.constant 0 : index
    %8 = vector.load %arg2[%c1, %c0_9, %c0_10] : memref<3x16x32xf32, #tpu.memory_space<vmem>>, vector<1x16x32xf32>
    %9 = vector.shape_cast %8 : vector<1x16x32xf32> to vector<16x32xf32>
    %cst_11 = arith.constant dense<0.000000e+00> : vector<16x96xf32>
    %10 = tpu.matmul %9, %1, %cst_11 {dimension_numbers = #tpu.dot_dimension_numbers<[1], [0], [0], [1], [0, 0, 1, 1], [], []>} : vector<16x32xf32>, vector<32x96xf32>, vector<16x96xf32> -> vector<16x96xf32>
    %c1_12 = arith.constant 1 : index
    %c0_13 = arith.constant 0 : index
    %c0_14 = arith.constant 0 : index
    %11 = vector.load %arg3[%c1_12, %c0_13, %c0_14] : memref<3x96x32xf32, #tpu.memory_space<vmem>>, vector<1x96x32xf32>
    %12 = vector.shape_cast %11 : vector<1x96x32xf32> to vector<96x32xf32>
    %cst_15 = arith.constant dense<0.000000e+00> : vector<16x32xf32>
    %13 = tpu.matmul %10, %12, %cst_15 {dimension_numbers = #tpu.dot_dimension_numbers<[1], [0], [0], [1], [0, 0, 1, 1], [], []>} : vector<16x96xf32>, vector<96x32xf32>, vector<16x32xf32> -> vector<16x32xf32>
    %14 = arith.addf %7, %13 : vector<16x32xf32>
    %c2 = arith.constant 2 : index
    %c0_16 = arith.constant 0 : index
    %c0_17 = arith.constant 0 : index
    %15 = vector.load %arg2[%c2, %c0_16, %c0_17] : memref<3x16x32xf32, #tpu.memory_space<vmem>>, vector<1x16x32xf32>
    %16 = vector.shape_cast %15 : vector<1x16x32xf32> to vector<16x32xf32>
    %cst_18 = arith.constant dense<0.000000e+00> : vector<16x96xf32>
    %17 = tpu.matmul %16, %1, %cst_18 {dimension_numbers = #tpu.dot_dimension_numbers<[1], [0], [0], [1], [0, 0, 1, 1], [], []>} : vector<16x32xf32>, vector<32x96xf32>, vector<16x96xf32> -> vector<16x96xf32>
    %c2_19 = arith.constant 2 : index
    %c0_20 = arith.constant 0 : index
    %c0_21 = arith.constant 0 : index
    %18 = vector.load %arg3[%c2_19, %c0_20, %c0_21] : memref<3x96x32xf32, #tpu.memory_space<vmem>>, vector<1x96x32xf32>
    %19 = vector.shape_cast %18 : vector<1x96x32xf32> to vector<96x32xf32>
    %cst_22 = arith.constant dense<0.000000e+00> : vector<16x32xf32>
    %20 = tpu.matmul %17, %19, %cst_22 {dimension_numbers = #tpu.dot_dimension_numbers<[1], [0], [0], [1], [0, 0, 1, 1], [], []>} : vector<16x96xf32>, vector<96x32xf32>, vector<16x32xf32> -> vector<16x32xf32>
    %21 = arith.addf %14, %20 : vector<16x32xf32>
    %c0_23 = arith.constant 0 : index
    %c0_24 = arith.constant 0 : index
    %22 = vector.load %arg4[%c0_23, %c0_24] : memref<1x32xf32, #tpu.memory_space<vmem>>, vector<1x32xf32>
    %23 = vector.broadcast %22 : vector<1x32xf32> to vector<16x32xf32>
    %24 = arith.addf %21, %23 : vector<16x32xf32>
    %cst_25 = arith.constant 0.000000e+00 : f32
    %25 = vector.broadcast %cst_25 : f32 to vector<16x32xf32>
    %26 = arith.maximumf %24, %25 : vector<16x32xf32>
    %c0_26 = arith.constant 0 : index
    %c0_27 = arith.constant 0 : index
    %c0_28 = arith.constant 0 : index
    %27 = vector.load %arg5[%c0_26, %c0_27, %c0_28] : memref<3x8x16xf32, #tpu.memory_space<vmem>>, vector<1x8x16xf32>
    %28 = vector.shape_cast %27 : vector<1x8x16xf32> to vector<8x16xf32>
    %cst_29 = arith.constant dense<0.000000e+00> : vector<8x32xf32>
    %29 = tpu.matmul %28, %26, %cst_29 {dimension_numbers = #tpu.dot_dimension_numbers<[1], [0], [0], [1], [0, 0, 1, 1], [], []>} : vector<8x16xf32>, vector<16x32xf32>, vector<8x32xf32> -> vector<8x32xf32>
    %c0_30 = arith.constant 0 : index
    %c0_31 = arith.constant 0 : index
    %c0_32 = arith.constant 0 : index
    %30 = vector.load %arg6[%c0_30, %c0_31, %c0_32] : memref<3x32x32xf32, #tpu.memory_space<vmem>>, vector<1x32x32xf32>
    %31 = vector.shape_cast %30 : vector<1x32x32xf32> to vector<32x32xf32>
    %cst_33 = arith.constant dense<0.000000e+00> : vector<8x32xf32>
    %32 = tpu.matmul %29, %31, %cst_33 {dimension_numbers = #tpu.dot_dimension_numbers<[1], [0], [0], [1], [0, 0, 1, 1], [], []>} : vector<8x32xf32>, vector<32x32xf32>, vector<8x32xf32> -> vector<8x32xf32>
    %c1_34 = arith.constant 1 : index
    %c0_35 = arith.constant 0 : index
    %c0_36 = arith.constant 0 : index
    %33 = vector.load %arg5[%c1_34, %c0_35, %c0_36] : memref<3x8x16xf32, #tpu.memory_space<vmem>>, vector<1x8x16xf32>
    %34 = vector.shape_cast %33 : vector<1x8x16xf32> to vector<8x16xf32>
    %cst_37 = arith.constant dense<0.000000e+00> : vector<8x32xf32>
    %35 = tpu.matmul %34, %26, %cst_37 {dimension_numbers = #tpu.dot_dimension_numbers<[1], [0], [0], [1], [0, 0, 1, 1], [], []>} : vector<8x16xf32>, vector<16x32xf32>, vector<8x32xf32> -> vector<8x32xf32>
    %c1_38 = arith.constant 1 : index
    %c0_39 = arith.constant 0 : index
    %c0_40 = arith.constant 0 : index
    %36 = vector.load %arg6[%c1_38, %c0_39, %c0_40] : memref<3x32x32xf32, #tpu.memory_space<vmem>>, vector<1x32x32xf32>
    %37 = vector.shape_cast %36 : vector<1x32x32xf32> to vector<32x32xf32>
    %cst_41 = arith.constant dense<0.000000e+00> : vector<8x32xf32>
    %38 = tpu.matmul %35, %37, %cst_41 {dimension_numbers = #tpu.dot_dimension_numbers<[1], [0], [0], [1], [0, 0, 1, 1], [], []>} : vector<8x32xf32>, vector<32x32xf32>, vector<8x32xf32> -> vector<8x32xf32>
    %39 = arith.addf %32, %38 : vector<8x32xf32>
    %c2_42 = arith.constant 2 : index
    %c0_43 = arith.constant 0 : index
    %c0_44 = arith.constant 0 : index
    %40 = vector.load %arg5[%c2_42, %c0_43, %c0_44] : memref<3x8x16xf32, #tpu.memory_space<vmem>>, vector<1x8x16xf32>
    %41 = vector.shape_cast %40 : vector<1x8x16xf32> to vector<8x16xf32>
    %cst_45 = arith.constant dense<0.000000e+00> : vector<8x32xf32>
    %42 = tpu.matmul %41, %26, %cst_45 {dimension_numbers = #tpu.dot_dimension_numbers<[1], [0], [0], [1], [0, 0, 1, 1], [], []>} : vector<8x16xf32>, vector<16x32xf32>, vector<8x32xf32> -> vector<8x32xf32>
    %c2_46 = arith.constant 2 : index
    %c0_47 = arith.constant 0 : index
    %c0_48 = arith.constant 0 : index
    %43 = vector.load %arg6[%c2_46, %c0_47, %c0_48] : memref<3x32x32xf32, #tpu.memory_space<vmem>>, vector<1x32x32xf32>
    %44 = vector.shape_cast %43 : vector<1x32x32xf32> to vector<32x32xf32>
    %cst_49 = arith.constant dense<0.000000e+00> : vector<8x32xf32>
    %45 = tpu.matmul %42, %44, %cst_49 {dimension_numbers = #tpu.dot_dimension_numbers<[1], [0], [0], [1], [0, 0, 1, 1], [], []>} : vector<8x32xf32>, vector<32x32xf32>, vector<8x32xf32> -> vector<8x32xf32>
    %46 = arith.addf %39, %45 : vector<8x32xf32>
    %c0_50 = arith.constant 0 : index
    %c0_51 = arith.constant 0 : index
    %47 = vector.load %arg7[%c0_50, %c0_51] : memref<1x32xf32, #tpu.memory_space<vmem>>, vector<1x32xf32>
    %48 = vector.broadcast %47 : vector<1x32xf32> to vector<8x32xf32>
    %49 = arith.addf %46, %48 : vector<8x32xf32>
    %cst_52 = arith.constant 0.000000e+00 : f32
    %50 = vector.broadcast %cst_52 : f32 to vector<8x32xf32>
    %51 = arith.maximumf %49, %50 : vector<8x32xf32>
    %c0_53 = arith.constant 0 : index
    %c0_54 = arith.constant 0 : index
    %c0_55 = arith.constant 0 : index
    %52 = vector.load %arg8[%c0_53, %c0_54, %c0_55] : memref<3x4x8xf32, #tpu.memory_space<vmem>>, vector<1x4x8xf32>
    %53 = vector.shape_cast %52 : vector<1x4x8xf32> to vector<4x8xf32>
    %cst_56 = arith.constant dense<0.000000e+00> : vector<4x32xf32>
    %54 = tpu.matmul %53, %51, %cst_56 {dimension_numbers = #tpu.dot_dimension_numbers<[1], [0], [0], [1], [0, 0, 1, 1], [], []>} : vector<4x8xf32>, vector<8x32xf32>, vector<4x32xf32> -> vector<4x32xf32>
    %c0_57 = arith.constant 0 : index
    %c0_58 = arith.constant 0 : index
    %c0_59 = arith.constant 0 : index
    %55 = vector.load %arg9[%c0_57, %c0_58, %c0_59] : memref<3x32x32xf32, #tpu.memory_space<vmem>>, vector<1x32x32xf32>
    %56 = vector.shape_cast %55 : vector<1x32x32xf32> to vector<32x32xf32>
    %cst_60 = arith.constant dense<0.000000e+00> : vector<4x32xf32>
    %57 = tpu.matmul %54, %56, %cst_60 {dimension_numbers = #tpu.dot_dimension_numbers<[1], [0], [0], [1], [0, 0, 1, 1], [], []>} : vector<4x32xf32>, vector<32x32xf32>, vector<4x32xf32> -> vector<4x32xf32>
    %c1_61 = arith.constant 1 : index
    %c0_62 = arith.constant 0 : index
    %c0_63 = arith.constant 0 : index
    %58 = vector.load %arg8[%c1_61, %c0_62, %c0_63] : memref<3x4x8xf32, #tpu.memory_space<vmem>>, vector<1x4x8xf32>
    %59 = vector.shape_cast %58 : vector<1x4x8xf32> to vector<4x8xf32>
    %cst_64 = arith.constant dense<0.000000e+00> : vector<4x32xf32>
    %60 = tpu.matmul %59, %51, %cst_64 {dimension_numbers = #tpu.dot_dimension_numbers<[1], [0], [0], [1], [0, 0, 1, 1], [], []>} : vector<4x8xf32>, vector<8x32xf32>, vector<4x32xf32> -> vector<4x32xf32>
    %c1_65 = arith.constant 1 : index
    %c0_66 = arith.constant 0 : index
    %c0_67 = arith.constant 0 : index
    %61 = vector.load %arg9[%c1_65, %c0_66, %c0_67] : memref<3x32x32xf32, #tpu.memory_space<vmem>>, vector<1x32x32xf32>
    %62 = vector.shape_cast %61 : vector<1x32x32xf32> to vector<32x32xf32>
    %cst_68 = arith.constant dense<0.000000e+00> : vector<4x32xf32>
    %63 = tpu.matmul %60, %62, %cst_68 {dimension_numbers = #tpu.dot_dimension_numbers<[1], [0], [0], [1], [0, 0, 1, 1], [], []>} : vector<4x32xf32>, vector<32x32xf32>, vector<4x32xf32> -> vector<4x32xf32>
    %64 = arith.addf %57, %63 : vector<4x32xf32>
    %c2_69 = arith.constant 2 : index
    %c0_70 = arith.constant 0 : index
    %c0_71 = arith.constant 0 : index
    %65 = vector.load %arg8[%c2_69, %c0_70, %c0_71] : memref<3x4x8xf32, #tpu.memory_space<vmem>>, vector<1x4x8xf32>
    %66 = vector.shape_cast %65 : vector<1x4x8xf32> to vector<4x8xf32>
    %cst_72 = arith.constant dense<0.000000e+00> : vector<4x32xf32>
    %67 = tpu.matmul %66, %51, %cst_72 {dimension_numbers = #tpu.dot_dimension_numbers<[1], [0], [0], [1], [0, 0, 1, 1], [], []>} : vector<4x8xf32>, vector<8x32xf32>, vector<4x32xf32> -> vector<4x32xf32>
    %c2_73 = arith.constant 2 : index
    %c0_74 = arith.constant 0 : index
    %c0_75 = arith.constant 0 : index
    %68 = vector.load %arg9[%c2_73, %c0_74, %c0_75] : memref<3x32x32xf32, #tpu.memory_space<vmem>>, vector<1x32x32xf32>
    %69 = vector.shape_cast %68 : vector<1x32x32xf32> to vector<32x32xf32>
    %cst_76 = arith.constant dense<0.000000e+00> : vector<4x32xf32>
    %70 = tpu.matmul %67, %69, %cst_76 {dimension_numbers = #tpu.dot_dimension_numbers<[1], [0], [0], [1], [0, 0, 1, 1], [], []>} : vector<4x32xf32>, vector<32x32xf32>, vector<4x32xf32> -> vector<4x32xf32>
    %71 = arith.addf %64, %70 : vector<4x32xf32>
    %c0_77 = arith.constant 0 : index
    %c0_78 = arith.constant 0 : index
    %72 = vector.load %arg10[%c0_77, %c0_78] : memref<1x32xf32, #tpu.memory_space<vmem>>, vector<1x32xf32>
    %73 = vector.broadcast %72 : vector<1x32xf32> to vector<4x32xf32>
    %74 = arith.addf %71, %73 : vector<4x32xf32>
    %cst_79 = arith.constant 0.000000e+00 : f32
    %75 = vector.broadcast %cst_79 : f32 to vector<4x32xf32>
    %76 = arith.maximumf %74, %75 : vector<4x32xf32>
    %77 = vector.extract_strided_slice %76 {offsets = [0, 0], sizes = [1, 32], strides = [1, 1]} : vector<4x32xf32> to vector<1x32xf32>
    %c0_80 = arith.constant 0 : index
    %c0_81 = arith.constant 0 : index
    %c0_82 = arith.constant 0 : index
    %78 = vector.load %arg11[%c0_80, %c0_81, %c0_82] : memref<4x32x32xf32, #tpu.memory_space<vmem>>, vector<1x32x32xf32>
    %79 = vector.shape_cast %78 : vector<1x32x32xf32> to vector<32x32xf32>
    %cst_83 = arith.constant dense<0.000000e+00> : vector<1x32xf32>
    %80 = tpu.matmul %77, %79, %cst_83 {dimension_numbers = #tpu.dot_dimension_numbers<[1], [0], [0], [1], [0, 0, 1, 1], [], []>} : vector<1x32xf32>, vector<32x32xf32>, vector<1x32xf32> -> vector<1x32xf32>
    %81 = vector.extract_strided_slice %76 {offsets = [1, 0], sizes = [1, 32], strides = [1, 1]} : vector<4x32xf32> to vector<1x32xf32>
    %c1_84 = arith.constant 1 : index
    %c0_85 = arith.constant 0 : index
    %c0_86 = arith.constant 0 : index
    %82 = vector.load %arg11[%c1_84, %c0_85, %c0_86] : memref<4x32x32xf32, #tpu.memory_space<vmem>>, vector<1x32x32xf32>
    %83 = vector.shape_cast %82 : vector<1x32x32xf32> to vector<32x32xf32>
    %cst_87 = arith.constant dense<0.000000e+00> : vector<1x32xf32>
    %84 = tpu.matmul %81, %83, %cst_87 {dimension_numbers = #tpu.dot_dimension_numbers<[1], [0], [0], [1], [0, 0, 1, 1], [], []>} : vector<1x32xf32>, vector<32x32xf32>, vector<1x32xf32> -> vector<1x32xf32>
    %85 = arith.addf %80, %84 : vector<1x32xf32>
    %86 = vector.extract_strided_slice %76 {offsets = [2, 0], sizes = [1, 32], strides = [1, 1]} : vector<4x32xf32> to vector<1x32xf32>
    %c2_88 = arith.constant 2 : index
    %c0_89 = arith.constant 0 : index
    %c0_90 = arith.constant 0 : index
    %87 = vector.load %arg11[%c2_88, %c0_89, %c0_90] : memref<4x32x32xf32, #tpu.memory_space<vmem>>, vector<1x32x32xf32>
    %88 = vector.shape_cast %87 : vector<1x32x32xf32> to vector<32x32xf32>
    %cst_91 = arith.constant dense<0.000000e+00> : vector<1x32xf32>
    %89 = tpu.matmul %86, %88, %cst_91 {dimension_numbers = #tpu.dot_dimension_numbers<[1], [0], [0], [1], [0, 0, 1, 1], [], []>} : vector<1x32xf32>, vector<32x32xf32>, vector<1x32xf32> -> vector<1x32xf32>
    %90 = arith.addf %85, %89 : vector<1x32xf32>
    %91 = vector.extract_strided_slice %76 {offsets = [3, 0], sizes = [1, 32], strides = [1, 1]} : vector<4x32xf32> to vector<1x32xf32>
    %c3 = arith.constant 3 : index
    %c0_92 = arith.constant 0 : index
    %c0_93 = arith.constant 0 : index
    %92 = vector.load %arg11[%c3, %c0_92, %c0_93] : memref<4x32x32xf32, #tpu.memory_space<vmem>>, vector<1x32x32xf32>
    %93 = vector.shape_cast %92 : vector<1x32x32xf32> to vector<32x32xf32>
    %cst_94 = arith.constant dense<0.000000e+00> : vector<1x32xf32>
    %94 = tpu.matmul %91, %93, %cst_94 {dimension_numbers = #tpu.dot_dimension_numbers<[1], [0], [0], [1], [0, 0, 1, 1], [], []>} : vector<1x32xf32>, vector<32x32xf32>, vector<1x32xf32> -> vector<1x32xf32>
    %95 = arith.addf %90, %94 : vector<1x32xf32>
    %c0_95 = arith.constant 0 : index
    %c0_96 = arith.constant 0 : index
    %96 = vector.load %arg12[%c0_95, %c0_96] : memref<1x32xf32, #tpu.memory_space<vmem>>, vector<1x32xf32>
    %97 = arith.addf %95, %96 : vector<1x32xf32>
    %98 = vector.extract_strided_slice %97 {offsets = [0, 0], sizes = [1, 16], strides = [1, 1]} : vector<1x32xf32> to vector<1x16xf32>
    %99 = vector.extract_strided_slice %97 {offsets = [0, 16], sizes = [1, 16], strides = [1, 1]} : vector<1x32xf32> to vector<1x16xf32>
    %c0_97 = arith.constant 0 : index
    %c0_98 = arith.constant 0 : index
    %c0_99 = arith.constant 0 : index
    %100 = vector.load %arg13[%c0_97, %c0_98, %c0_99] : memref<1x1x16xf32, #tpu.memory_space<vmem>>, vector<1x1x16xf32>
    %101 = vector.shape_cast %100 : vector<1x1x16xf32> to vector<1x16xf32>
    %cst_100 = arith.constant 5.000000e-01 : f32
    %102 = vector.broadcast %cst_100 : f32 to vector<1x16xf32>
    %103 = arith.mulf %99, %102 : vector<1x16xf32>
    %104 = math.exp %103 : vector<1x16xf32>
    %105 = arith.mulf %101, %104 : vector<1x16xf32>
    %106 = arith.addf %98, %105 : vector<1x16xf32>
    %c0_101 = arith.constant 0 : index
    %c0_102 = arith.constant 0 : index
    %c0_103 = arith.constant 0 : index
    %107 = vector.load %arg15[%c0_101, %c0_102, %c0_103] : memref<1x1x16xf32, #tpu.memory_space<vmem>>, vector<1x1x16xf32>
    %108 = vector.shape_cast %107 : vector<1x1x16xf32> to vector<1x16xf32>
    %109 = vector.shape_cast %98 : vector<1x16xf32> to vector<1x1x16xf32>
    tpu.vector_store %arg15[%c0_101, %c0_102, %c0_103], %109 {strides = array<i32>} : memref<1x1x16xf32, #tpu.memory_space<vmem>>, vector<1x1x16xf32>,
    %c0_104 = arith.constant 0 : index
    %c0_105 = arith.constant 0 : index
    %c0_106 = arith.constant 0 : index
    %110 = vector.load %arg16[%c0_104, %c0_105, %c0_106] : memref<1x1x16xf32, #tpu.memory_space<vmem>>, vector<1x1x16xf32>
    %111 = vector.shape_cast %110 : vector<1x1x16xf32> to vector<1x16xf32>
    %112 = vector.shape_cast %99 : vector<1x16xf32> to vector<1x1x16xf32>
    tpu.vector_store %arg16[%c0_104, %c0_105, %c0_106], %112 {strides = array<i32>} : memref<1x1x16xf32, #tpu.memory_space<vmem>>, vector<1x1x16xf32>,
    %c0_107 = arith.constant 0 : index
    %c0_108 = arith.constant 0 : index
    %c0_109 = arith.constant 0 : index
    %113 = vector.load %arg14[%c0_107, %c0_108, %c0_109] : memref<1x1x16xf32, #tpu.memory_space<vmem>>, vector<1x1x16xf32>
    %114 = vector.shape_cast %113 : vector<1x1x16xf32> to vector<1x16xf32>
    %115 = vector.shape_cast %106 : vector<1x16xf32> to vector<1x1x16xf32>
    tpu.vector_store %arg14[%c0_107, %c0_108, %c0_109], %115 {strides = array<i32>} : memref<1x1x16xf32, #tpu.memory_space<vmem>>, vector<1x1x16xf32>,
    return
  }
  func.func @transform_0(%arg0: i32) -> (i32, i32, i32) {
    %c0_i32 = arith.constant 0 : i32
    %c0_i32_0 = arith.constant 0 : i32
    %c0_i32_1 = arith.constant 0 : i32
    return %arg0, %c0_i32, %c0_i32_0 : i32, i32, i32
  }
  func.func @transform_1(%arg0: i32) -> (i32, i32, i32) {
    %c0_i32 = arith.constant 0 : i32
    %c0_i32_0 = arith.constant 0 : i32
    %c0_i32_1 = arith.constant 0 : i32
    %c0_i32_2 = arith.constant 0 : i32
    return %c0_i32, %c0_i32_0, %c0_i32_1 : i32, i32, i32
  }
  func.func @transform_2(%arg0: i32) -> (i32, i32, i32) {
    %c0_i32 = arith.constant 0 : i32
    %c0_i32_0 = arith.constant 0 : i32
    %c0_i32_1 = arith.constant 0 : i32
    %c0_i32_2 = arith.constant 0 : i32
    return %c0_i32, %c0_i32_0, %c0_i32_1 : i32, i32, i32
  }
  func.func @transform_3(%arg0: i32) -> (i32, i32) {
    %c0_i32 = arith.constant 0 : i32
    %c0_i32_0 = arith.constant 0 : i32
    %c0_i32_1 = arith.constant 0 : i32
    return %c0_i32, %c0_i32_0 : i32, i32
  }
  func.func @transform_4(%arg0: i32) -> (i32, i32, i32) {
    %c0_i32 = arith.constant 0 : i32
    %c0_i32_0 = arith.constant 0 : i32
    %c0_i32_1 = arith.constant 0 : i32
    %c0_i32_2 = arith.constant 0 : i32
    return %c0_i32, %c0_i32_0, %c0_i32_1 : i32, i32, i32
  }
  func.func @transform_5(%arg0: i32) -> (i32, i32, i32) {
    %c0_i32 = arith.constant 0 : i32
    %c0_i32_0 = arith.constant 0 : i32
    %c0_i32_1 = arith.constant 0 : i32
    %c0_i32_2 = arith.constant 0 : i32
    return %c0_i32, %c0_i32_0, %c0_i32_1 : i32, i32, i32
  }
  func.func @transform_6(%arg0: i32) -> (i32, i32) {
    %c0_i32 = arith.constant 0 : i32
    %c0_i32_0 = arith.constant 0 : i32
    %c0_i32_1 = arith.constant 0 : i32
    return %c0_i32, %c0_i32_0 : i32, i32
  }
  func.func @transform_7(%arg0: i32) -> (i32, i32, i32) {
    %c0_i32 = arith.constant 0 : i32
    %c0_i32_0 = arith.constant 0 : i32
    %c0_i32_1 = arith.constant 0 : i32
    %c0_i32_2 = arith.constant 0 : i32
    return %c0_i32, %c0_i32_0, %c0_i32_1 : i32, i32, i32
  }
  func.func @transform_8(%arg0: i32) -> (i32, i32, i32) {
    %c0_i32 = arith.constant 0 : i32
    %c0_i32_0 = arith.constant 0 : i32
    %c0_i32_1 = arith.constant 0 : i32
    %c0_i32_2 = arith.constant 0 : i32
    return %c0_i32, %c0_i32_0, %c0_i32_1 : i32, i32, i32
  }
  func.func @transform_9(%arg0: i32) -> (i32, i32) {
    %c0_i32 = arith.constant 0 : i32
    %c0_i32_0 = arith.constant 0 : i32
    %c0_i32_1 = arith.constant 0 : i32
    return %c0_i32, %c0_i32_0 : i32, i32
  }
  func.func @transform_10(%arg0: i32) -> (i32, i32, i32) {
    %c0_i32 = arith.constant 0 : i32
    %c0_i32_0 = arith.constant 0 : i32
    %c0_i32_1 = arith.constant 0 : i32
    %c0_i32_2 = arith.constant 0 : i32
    return %c0_i32, %c0_i32_0, %c0_i32_1 : i32, i32, i32
  }
  func.func @transform_11(%arg0: i32) -> (i32, i32) {
    %c0_i32 = arith.constant 0 : i32
    %c0_i32_0 = arith.constant 0 : i32
    %c0_i32_1 = arith.constant 0 : i32
    return %c0_i32, %c0_i32_0 : i32, i32
  }
  func.func @transform_12(%arg0: i32) -> (i32, i32, i32) {
    %c0_i32 = arith.constant 0 : i32
    %c0_i32_0 = arith.constant 0 : i32
    %c0_i32_1 = arith.constant 0 : i32
    return %arg0, %c0_i32, %c0_i32_0 : i32, i32, i32
  }
  func.func @transform_13(%arg0: i32) -> (i32, i32, i32) {
    %c0_i32 = arith.constant 0 : i32
    %c0_i32_0 = arith.constant 0 : i32
    %c0_i32_1 = arith.constant 0 : i32
    return %arg0, %c0_i32, %c0_i32_0 : i32, i32, i32
  }
  func.func @transform_14(%arg0: i32) -> (i32, i32, i32) {
    %c0_i32 = arith.constant 0 : i32
    %c0_i32_0 = arith.constant 0 : i32
    %c0_i32_1 = arith.constant 0 : i32
    return %arg0, %c0_i32, %c0_i32_0 : i32, i32, i32
  }
  func.func @transform_15(%arg0: i32) -> (i32, i32, i32) {
    %c0_i32 = arith.constant 0 : i32
    %c0_i32_0 = arith.constant 0 : i32
    %c0_i32_1 = arith.constant 0 : i32
    return %arg0, %c0_i32, %c0_i32_0 : i32, i32, i32
  }
}

</mosaic_0001>

<llo_original>
// kernel: encoder_forward.1
$region0: #{encoder_forward.1}
  #allocation0 [shape = 'u32[]', space=smem, size = 0x4, offset = 0x4, fixed_abs, tag = 'smem constant byte address 0x4 - core index']
  #allocation1 [shape = 'u32[144,128]{1,0:T(1,128)}', space=vmem, size = 0x12000, scoped, tag = 'internal scratch']
  %s0 = inlined_call_operand.vmem [shape: f32[2,32,96], index: 0, kind: input, shape index: {}]
  %s1 = inlined_call_operand.vmem [shape: f32[3,16,32], index: 1, kind: input, shape index: {}]
  %s2 = inlined_call_operand.vmem [shape: f32[3,96,32], index: 2, kind: input, shape index: {}]
  %s3 = inlined_call_operand.vmem [shape: f32[1,32], index: 3, kind: input, shape index: {}]
  %s4 = inlined_call_operand.vmem [shape: f32[3,8,16], index: 4, kind: input, shape index: {}]
  %s5 = inlined_call_operand.vmem [shape: f32[3,32,32], index: 5, kind: input, shape index: {}]
  %s6 = inlined_call_operand.vmem [shape: f32[1,32], index: 6, kind: input, shape index: {}]
  %s7 = inlined_call_operand.vmem [shape: f32[3,4,8], index: 7, kind: input, shape index: {}]
  %s8 = inlined_call_operand.vmem [shape: f32[3,32,32], index: 8, kind: input, shape index: {}]
  %s9 = inlined_call_operand.vmem [shape: f32[1,32], index: 9, kind: input, shape index: {}]
  %s10 = inlined_call_operand.vmem [shape: f32[4,32,32], index: 10, kind: input, shape index: {}]
  %s11 = inlined_call_operand.vmem [shape: f32[1,32], index: 11, kind: input, shape index: {}]
  %s12 = inlined_call_operand.vmem [shape: f32[2,1,16], index: 12, kind: input, shape index: {}]
  %s13 = inlined_call_operand.hbm [shape: f32[2,1,16], index: 13, kind: output, shape index: {0}]
  %s14 = inlined_call_operand.hbm [shape: f32[2,1,16], index: 14, kind: output, shape index: {1}]
  %s15 = inlined_call_operand.hbm [shape: f32[2,1,16], index: 15, kind: output, shape index: {2}]
  %16 = xla_tuple %s13, %s14, %s15
  %s17 = sld [smem:[#allocation0]]
  $region101: #{encoder_forward.1} parent=0
    _
  %s19 = ssub.s32 1, %s17
  %s20 = scalar_select 0, %s19, %s17
  $region1: #{encoder_forward.1} parent=0
    #allocation2 [shape = 'u8[1024]{0}', space=vmem, size = 0x400, scoped, tag = 'output window, operand 0']
    #allocation3 [shape = 's32[2]{0}', space=sflag, size = 0x8, scoped, tag = 'scoped memory for encoder_forward.1']
    #allocation4 [shape = 'u8[1024]{0}', space=vmem, size = 0x400, scoped, tag = 'output window, operand 1']
    #allocation5 [shape = 's32[2]{0}', space=sflag, size = 0x8, scoped, tag = 'scoped memory for encoder_forward.1']
    #allocation6 [shape = 'u8[1024]{0}', space=vmem, size = 0x400, scoped, tag = 'output window, operand 2']
    %21 = vsyncpa [#allocation3], 0
    %s22 = scalar_lea.sflag [#allocation3], 1
    %23 = vsyncpa %s22, 0
    %24 = vsyncpa [#allocation5], 0
    %s25 = scalar_lea.sflag [#allocation5], 1
    %26 = vsyncpa %s25, 0
    loop: start=0, step=1, limit=4
    $region2: #{encoder_forward.1} parent=1 // loop_pre_header
      _
    $region3: #{encoder_forward.1} parent=1 // loop_header
      %s28 = sphi 0, %s32
      %p29 = scmp.ge.s32.totalorder %s28, 4
      %s38 = sphi 0, %s40
      %s41 = sphi 0, %s38
      %s42 = sphi 0, %s41
      %s58 = sphi 0, %s42
      %s62 = sphi 0, %s62
      %s64 = sphi 0, %s62
      %s65 = sphi 0, %s64
      %s79 = sphi 0, %s65
      %s83 = sphi 0, %s83
      %s85 = sphi 0, %s83
      %s86 = sphi 0, %s85
      %s100 = sphi 0, %s86
      %s104 = sphi 0, %s104
      %s106 = sphi 0, %s104
      %s107 = sphi 0, %s106
      %s121 = sphi 0, %s107
      %s125 = sphi 0, %s125
      %s127 = sphi 0, %s125
      %s128 = sphi 0, %s127
      %s142 = sphi 0, %s128
      %s146 = sphi 0, %s146
      %s148 = sphi 0, %s146
      %s149 = sphi 0, %s148
      %s163 = sphi 0, %s149
      %s167 = sphi 0, %s167
      %s169 = sphi 0, %s167
      %s170 = sphi 0, %s169
      %s184 = sphi 0, %s170
      %s188 = sphi 0, %s188
      %s190 = sphi 0, %s188
      %s191 = sphi 0, %s190
      %s205 = sphi 0, %s191
      %s209 = sphi 0, %s209
      %s211 = sphi 0, %s209
      %s212 = sphi 0, %s211
      %s226 = sphi 0, %s212
      %s230 = sphi 0, %s230
      %s232 = sphi 0, %s230
      %s233 = sphi 0, %s232
      %s247 = sphi 0, %s233
      %s251 = sphi 0, %s251
      %s253 = sphi 0, %s251
      %s254 = sphi 0, %s253
      %s268 = sphi 0, %s254
      %s272 = sphi 0, %s272
      %s274 = sphi 0, %s272
      %s275 = sphi 0, %s274
      %s289 = sphi 0, %s275
      %s295 = sphi 0, %s297
      %s298 = sphi 0, %s295
      %s299 = sphi 0, %s298
      %s315 = sphi 0, %s299
      %s321 = sphi 0, %s323
      %s324 = sphi 0, %s321
      %s325 = sphi 0, %s324
      %s341 = sphi 0, %s325
      %s347 = sphi 0, %s349
      %s350 = sphi 0, %s347
      %s351 = sphi 0, %s350
      %s367 = sphi 0, %s351
      %s373 = sphi 0, %s375
      %s376 = sphi 0, %s373
      %s377 = sphi 0, %s376
      %s393 = sphi 0, %s377
    $region4: #{encoder_forward.1} parent=1 // loop_header_branch
      %31 = sbr.rel (%p29) target = $region8
    $region5: #{encoder_forward.1} parent=1 // loop_body
      %s33 = ssub.s32 %s28, 1
      %s34 = ssub.s32 %s28, 2
      %s35 = sadd.s32 %s28, 1
      %s36 = ssub.s32 %s28, %s35
      %p37 = scmp.eq.s32.totalorder %s36, 0
      %s39 = sadd.s32 %s38, 1
      %s40 = scalar_select %p37, %s38, %s39
      %p43 = pneg %p37
      %p44 = scmp.eq.s32.totalorder %s28, 1
      %p45 = por %p43, %p44
      %p46 = scmp.ne.s32.totalorder %s38, %s41
      %p47 = scmp.eq.s32.totalorder %s28, 0
      %p48 = por %p46, %p47
      %p49 = scmp.ne.s32.totalorder %s38, %s41
      %p50 = scmp.eq.s32.totalorder %s33, 1
      %p51 = por %p49, %p50
      %p52 = scmp.ne.s32.totalorder %s41, %s42
      %p53 = scmp.eq.s32.totalorder %s33, 0
      %p54 = por %p52, %p53
      %p55 = scmp.ne.s32.totalorder %s41, %s42
      %p56 = scmp.eq.s32.totalorder %s34, 1
      %p57 = por %p55, %p56
      %p59 = scmp.ne.s32.totalorder %s42, %s58
      %p60 = scmp.eq.s32.totalorder %s34, 0
      %p61 = por %p59, %p60
      %s63 = sadd.s32 %s62, 1
      %p66 = scmp.eq.s32.totalorder %s28, 1
      %p67 = scmp.ne.s32.totalorder %s62, %s64
      %p68 = scmp.eq.s32.totalorder %s28, 0
      %p69 = por %p67, %p68
      %p70 = scmp.ne.s32.totalorder %s62, %s64
      %p71 = scmp.eq.s32.totalorder %s33, 1
      %p72 = por %p70, %p71
      %p73 = scmp.ne.s32.totalorder %s64, %s65
      %p74 = scmp.eq.s32.totalorder %s33, 0
      %p75 = por %p73, %p74
      %p76 = scmp.ne.s32.totalorder %s64, %s65
      %p77 = scmp.eq.s32.totalorder %s34, 1
      %p78 = por %p76, %p77
      %p80 = scmp.ne.s32.totalorder %s65, %s79
      %p81 = scmp.eq.s32.totalorder %s34, 0
      %p82 = por %p80, %p81
      %s84 = sadd.s32 %s83, 1
      %p87 = scmp.eq.s32.totalorder %s28, 1
      %p88 = scmp.ne.s32.totalorder %s83, %s85
      %p89 = scmp.eq.s32.totalorder %s28, 0
      %p90 = por %p88, %p89
      %p91 = scmp.ne.s32.totalorder %s83, %s85
      %p92 = scmp.eq.s32.totalorder %s33, 1
      %p93 = por %p91, %p92
      %p94 = scmp.ne.s32.totalorder %s85, %s86
      %p95 = scmp.eq.s32.totalorder %s33, 0
      %p96 = por %p94, %p95
      %p97 = scmp.ne.s32.totalorder %s85, %s86
      %p98 = scmp.eq.s32.totalorder %s34, 1
      %p99 = por %p97, %p98
      %p101 = scmp.ne.s32.totalorder %s86, %s100
      %p102 = scmp.eq.s32.totalorder %s34, 0
      %p103 = por %p101, %p102
      %s105 = sadd.s32 %s104, 1
      %p108 = scmp.eq.s32.totalorder %s28, 1
      %p109 = scmp.ne.s32.totalorder %s104, %s106
      %p110 = scmp.eq.s32.totalorder %s28, 0
      %p111 = por %p109, %p110
      %p112 = scmp.ne.s32.totalorder %s104, %s106
      %p113 = scmp.eq.s32.totalorder %s33, 1
      %p114 = por %p112, %p113
      %p115 = scmp.ne.s32.totalorder %s106, %s107
      %p116 = scmp.eq.s32.totalorder %s33, 0
      %p117 = por %p115, %p116
      %p118 = scmp.ne.s32.totalorder %s106, %s107
      %p119 = scmp.eq.s32.totalorder %s34, 1
      %p120 = por %p118, %p119
      %p122 = scmp.ne.s32.totalorder %s107, %s121
      %p123 = scmp.eq.s32.totalorder %s34, 0
      %p124 = por %p122, %p123
      %s126 = sadd.s32 %s125, 1
      %p129 = scmp.eq.s32.totalorder %s28, 1
      %p130 = scmp.ne.s32.totalorder %s125, %s127
      %p131 = scmp.eq.s32.totalorder %s28, 0
      %p132 = por %p130, %p131
      %p133 = scmp.ne.s32.totalorder %s125, %s127
      %p134 = scmp.eq.s32.totalorder %s33, 1
      %p135 = por %p133, %p134
      %p136 = scmp.ne.s32.totalorder %s127, %s128
      %p137 = scmp.eq.s32.totalorder %s33, 0
      %p138 = por %p136, %p137
      %p139 = scmp.ne.s32.totalorder %s127, %s128
      %p140 = scmp.eq.s32.totalorder %s34, 1
      %p141 = por %p139, %p140
      %p143 = scmp.ne.s32.totalorder %s128, %s142
      %p144 = scmp.eq.s32.totalorder %s34, 0
      %p145 = por %p143, %p144
      %s147 = sadd.s32 %s146, 1
      %p150 = scmp.eq.s32.totalorder %s28, 1
      %p151 = scmp.ne.s32.totalorder %s146, %s148
      %p152 = scmp.eq.s32.totalorder %s28, 0
      %p153 = por %p151, %p152
      %p154 = scmp.ne.s32.totalorder %s146, %s148
      %p155 = scmp.eq.s32.totalorder %s33, 1
      %p156 = por %p154, %p155
      %p157 = scmp.ne.s32.totalorder %s148, %s149
      %p158 = scmp.eq.s32.totalorder %s33, 0
      %p159 = por %p157, %p158
      %p160 = scmp.ne.s32.totalorder %s148, %s149
      %p161 = scmp.eq.s32.totalorder %s34, 1
      %p162 = por %p160, %p161
      %p164 = scmp.ne.s32.totalorder %s149, %s163
      %p165 = scmp.eq.s32.totalorder %s34, 0
      %p166 = por %p164, %p165
      %s168 = sadd.s32 %s167, 1
      %p171 = scmp.eq.s32.totalorder %s28, 1
      %p172 = scmp.ne.s32.totalorder %s167, %s169
      %p173 = scmp.eq.s32.totalorder %s28, 0
      %p174 = por %p172, %p173
      %p175 = scmp.ne.s32.totalorder %s167, %s169
      %p176 = scmp.eq.s32.totalorder %s33, 1
      %p177 = por %p175, %p176
      %p178 = scmp.ne.s32.totalorder %s169, %s170
      %p179 = scmp.eq.s32.totalorder %s33, 0
      %p180 = por %p178, %p179
      %p181 = scmp.ne.s32.totalorder %s169, %s170
      %p182 = scmp.eq.s32.totalorder %s34, 1
      %p183 = por %p181, %p182
      %p185 = scmp.ne.s32.totalorder %s170, %s184
      %p186 = scmp.eq.s32.totalorder %s34, 0
      %p187 = por %p185, %p186
      %s189 = sadd.s32 %s188, 1
      %p192 = scmp.eq.s32.totalorder %s28, 1
      %p193 = scmp.ne.s32.totalorder %s188, %s190
      %p194 = scmp.eq.s32.totalorder %s28, 0
      %p195 = por %p193, %p194
      %p196 = scmp.ne.s32.totalorder %s188, %s190
      %p197 = scmp.eq.s32.totalorder %s33, 1
      %p198 = por %p196, %p197
      %p199 = scmp.ne.s32.totalorder %s190, %s191
      %p200 = scmp.eq.s32.totalorder %s33, 0
      %p201 = por %p199, %p200
      %p202 = scmp.ne.s32.totalorder %s190, %s191
      %p203 = scmp.eq.s32.totalorder %s34, 1
      %p204 = por %p202, %p203
      %p206 = scmp.ne.s32.totalorder %s191, %s205
      %p207 = scmp.eq.s32.totalorder %s34, 0
      %p208 = por %p206, %p207
      %s210 = sadd.s32 %s209, 1
      %p213 = scmp.eq.s32.totalorder %s28, 1
      %p214 = scmp.ne.s32.totalorder %s209, %s211
      %p215 = scmp.eq.s32.totalorder %s28, 0
      %p216 = por %p214, %p215
      %p217 = scmp.ne.s32.totalorder %s209, %s211
      %p218 = scmp.eq.s32.totalorder %s33, 1
      %p219 = por %p217, %p218
      %p220 = scmp.ne.s32.totalorder %s211, %s212
      %p221 = scmp.eq.s32.totalorder %s33, 0
      %p222 = por %p220, %p221
      %p223 = scmp.ne.s32.totalorder %s211, %s212
      %p224 = scmp.eq.s32.totalorder %s34, 1
      %p225 = por %p223, %p224
      %p227 = scmp.ne.s32.totalorder %s212, %s226
      %p228 = scmp.eq.s32.totalorder %s34, 0
      %p229 = por %p227, %p228
      %s231 = sadd.s32 %s230, 1
      %p234 = scmp.eq.s32.totalorder %s28, 1
      %p235 = scmp.ne.s32.totalorder %s230, %s232
      %p236 = scmp.eq.s32.totalorder %s28, 0
      %p237 = por %p235, %p236
      %p238 = scmp.ne.s32.totalorder %s230, %s232
      %p239 = scmp.eq.s32.totalorder %s33, 1
      %p240 = por %p238, %p239
      %p241 = scmp.ne.s32.totalorder %s232, %s233
      %p242 = scmp.eq.s32.totalorder %s33, 0
      %p243 = por %p241, %p242
      %p244 = scmp.ne.s32.totalorder %s232, %s233
      %p245 = scmp.eq.s32.totalorder %s34, 1
      %p246 = por %p244, %p245
      %p248 = scmp.ne.s32.totalorder %s233, %s247
      %p249 = scmp.eq.s32.totalorder %s34, 0
      %p250 = por %p248, %p249
      %s252 = sadd.s32 %s251, 1
      %p255 = scmp.eq.s32.totalorder %s28, 1
      %p256 = scmp.ne.s32.totalorder %s251, %s253
      %p257 = scmp.eq.s32.totalorder %s28, 0
      %p258 = por %p256, %p257
      %p259 = scmp.ne.s32.totalorder %s251, %s253
      %p260 = scmp.eq.s32.totalorder %s33, 1
      %p261 = por %p259, %p260
      %p262 = scmp.ne.s32.totalorder %s253, %s254
      %p263 = scmp.eq.s32.totalorder %s33, 0
      %p264 = por %p262, %p263
      %p265 = scmp.ne.s32.totalorder %s253, %s254
      %p266 = scmp.eq.s32.totalorder %s34, 1
      %p267 = por %p265, %p266
      %p269 = scmp.ne.s32.totalorder %s254, %s268
      %p270 = scmp.eq.s32.totalorder %s34, 0
      %p271 = por %p269, %p270
      %s273 = sadd.s32 %s272, 1
      %p276 = scmp.eq.s32.totalorder %s28, 1
      %p277 = scmp.ne.s32.totalorder %s272, %s274
      %p278 = scmp.eq.s32.totalorder %s28, 0
      %p279 = por %p277, %p278
      %p280 = scmp.ne.s32.totalorder %s272, %s274
      %p281 = scmp.eq.s32.totalorder %s33, 1
      %p282 = por %p280, %p281
      %p283 = scmp.ne.s32.totalorder %s274, %s275
      %p284 = scmp.eq.s32.totalorder %s33, 0
      %p285 = por %p283, %p284
      %p286 = scmp.ne.s32.totalorder %s274, %s275
      %p287 = scmp.eq.s32.totalorder %s34, 1
      %p288 = por %p286, %p287
      %p290 = scmp.ne.s32.totalorder %s275, %s289
      %p291 = scmp.eq.s32.totalorder %s34, 0
      %p292 = por %p290, %p291
      %s293 = ssub.s32 %s28, %s35
      %p294 = scmp.eq.s32.totalorder %s293, 0
      %s296 = sadd.s32 %s295, 1
      %s297 = scalar_select %p294, %s295, %s296
      %p300 = pneg %p294
      %p301 = scmp.eq.s32.totalorder %s28, 1
      %p302 = por %p300, %p301
      %p303 = scmp.ne.s32.totalorder %s295, %s298
      %p304 = scmp.eq.s32.totalorder %s28, 0
      %p305 = por %p303, %p304
      %p306 = scmp.ne.s32.totalorder %s295, %s298
      %p307 = scmp.eq.s32.totalorder %s33, 1
      %p308 = por %p306, %p307
      %p309 = scmp.ne.s32.totalorder %s298, %s299
      %p310 = scmp.eq.s32.totalorder %s33, 0
      %p311 = por %p309, %p310
      %p312 = scmp.ne.s32.totalorder %s298, %s299
      %p313 = scmp.eq.s32.totalorder %s34, 1
      %p314 = por %p312, %p313
      %p316 = scmp.ne.s32.totalorder %s299, %s315
      %p317 = scmp.eq.s32.totalorder %s34, 0
      %p318 = por %p316, %p317
      %s319 = ssub.s32 %s28, %s35
      %p320 = scmp.eq.s32.totalorder %s319, 0
      %s322 = sadd.s32 %s321, 1
      %s323 = scalar_select %p320, %s321, %s322
      %p326 = pneg %p320
      %p327 = scmp.eq.s32.totalorder %s28, 1
      %p328 = por %p326, %p327
      %p329 = scmp.ne.s32.totalorder %s321, %s324
      %p330 = scmp.eq.s32.totalorder %s28, 0
      %p331 = por %p329, %p330
      %p332 = scmp.ne.s32.totalorder %s321, %s324
      %p333 = scmp.eq.s32.totalorder %s33, 1
      %p334 = por %p332, %p333
      %p335 = scmp.ne.s32.totalorder %s324, %s325
      %p336 = scmp.eq.s32.totalorder %s33, 0
      %p337 = por %p335, %p336
      %p338 = scmp.ne.s32.totalorder %s324, %s325
      %p339 = scmp.eq.s32.totalorder %s34, 1
      %p340 = por %p338, %p339
      %p342 = scmp.ne.s32.totalorder %s325, %s341
      %p343 = scmp.eq.s32.totalorder %s34, 0
      %p344 = por %p342, %p343
      %s345 = ssub.s32 %s28, %s35
      %p346 = scmp.eq.s32.totalorder %s345, 0
      %s348 = sadd.s32 %s347, 1
      %s349 = scalar_select %p346, %s347, %s348
      %p352 = pneg %p346
      %p353 = scmp.eq.s32.totalorder %s28, 1
      %p354 = por %p352, %p353
      %p355 = scmp.ne.s32.totalorder %s347, %s350
      %p356 = scmp.eq.s32.totalorder %s28, 0
      %p357 = por %p355, %p356
      %p358 = scmp.ne.s32.totalorder %s347, %s350
      %p359 = scmp.eq.s32.totalorder %s33, 1
      %p360 = por %p358, %p359
      %p361 = scmp.ne.s32.totalorder %s350, %s351
      %p362 = scmp.eq.s32.totalorder %s33, 0
      %p363 = por %p361, %p362
      %p364 = scmp.ne.s32.totalorder %s350, %s351
      %p365 = scmp.eq.s32.totalorder %s34, 1
      %p366 = por %p364, %p365
      %p368 = scmp.ne.s32.totalorder %s351, %s367
      %p369 = scmp.eq.s32.totalorder %s34, 0
      %p370 = por %p368, %p369
      %s371 = ssub.s32 %s28, %s35
      %p372 = scmp.eq.s32.totalorder %s371, 0
      %s374 = sadd.s32 %s373, 1
      %s375 = scalar_select %p372, %s373, %s374
      %p378 = pneg %p372
      %p379 = scmp.eq.s32.totalorder %s28, 1
      %p380 = por %p378, %p379
      %p381 = scmp.ne.s32.totalorder %s373, %s376
      %p382 = scmp.eq.s32.totalorder %s28, 0
      %p383 = por %p381, %p382
      %p384 = scmp.ne.s32.totalorder %s373, %s376
      %p385 = scmp.eq.s32.totalorder %s33, 1
      %p386 = por %p384, %p385
      %p387 = scmp.ne.s32.totalorder %s376, %s377
      %p388 = scmp.eq.s32.totalorder %s33, 0
      %p389 = por %p387, %p388
      %p390 = scmp.ne.s32.totalorder %s376, %s377
      %p391 = scmp.eq.s32.totalorder %s34, 1
      %p392 = por %p390, %p391
      %p394 = scmp.ne.s32.totalorder %s377, %s393
      %p395 = scmp.eq.s32.totalorder %s34, 0
      %p396 = por %p394, %p395
      %p397 = scmp.le.s32.totalorder 1, %s28
      %p398 = scmp.lt.s32.totalorder %s28, 3
      %p399 = pnand %p397, %p398
      %p400 = pneg %p399
      // Predicated region
      $region9: #{encoder_forward.1} parent=5 // pred_check
        _
      $region10: #{encoder_forward.1} parent=5 // pred_check_branch
        %402 = sbr.rel (%p399) target = $region12
      $region11: #{encoder_forward.1} parent=5 // pred_region
        %s403 = ssub.s32 %s28, 1
        // Predicated region
        $region13: #{encoder_forward.1} parent=11 // pred_check
          %p404 = pneg %p75
        $region14: #{encoder_forward.1} parent=11 // pred_check_branch
          %406 = sbr.rel (%p404) target = $region16
        $region15: #{encoder_forward.1} parent=11 // pred_region
          _
        $region16: #{encoder_forward.1} parent=11 // pred_fallthru
          _
        // Predicated region
        $region17: #{encoder_forward.1} parent=11 // pred_check
          %p407 = pneg %p96
        $region18: #{encoder_forward.1} parent=11 // pred_check_branch
          %409 = sbr.rel (%p407) target = $region20
        $region19: #{encoder_forward.1} parent=11 // pred_region
          _
        $region20: #{encoder_forward.1} parent=11 // pred_fallthru
          _
        // Predicated region
        $region21: #{encoder_forward.1} parent=11 // pred_check
          %p410 = pneg %p117
        $region22: #{encoder_forward.1} parent=11 // pred_check_branch
          %412 = sbr.rel (%p410) target = $region24
        $region23: #{encoder_forward.1} parent=11 // pred_region
          _
        $region24: #{encoder_forward.1} parent=11 // pred_fallthru
          _
        // Predicated region
        $region25: #{encoder_forward.1} parent=11 // pred_check
          %p413 = pneg %p138
        $region26: #{encoder_forward.1} parent=11 // pred_check_branch
          %415 = sbr.rel (%p413) target = $region28
        $region27: #{encoder_forward.1} parent=11 // pred_region
          _
        $region28: #{encoder_forward.1} parent=11 // pred_fallthru
          _
        // Predicated region
        $region29: #{encoder_forward.1} parent=11 // pred_check
          %p416 = pneg %p159
        $region30: #{encoder_forward.1} parent=11 // pred_check_branch
          %418 = sbr.rel (%p416) target = $region32
        $region31: #{encoder_forward.1} parent=11 // pred_region
          _
        $region32: #{encoder_forward.1} parent=11 // pred_fallthru
          _
        // Predicated region
        $region33: #{encoder_forward.1} parent=11 // pred_check
          %p419 = pneg %p180
        $region34: #{encoder_forward.1} parent=11 // pred_check_branch
          %421 = sbr.rel (%p419) target = $region36
        $region35: #{encoder_forward.1} parent=11 // pred_region
          _
        $region36: #{encoder_forward.1} parent=11 // pred_fallthru
          _
        // Predicated region
        $region37: #{encoder_forward.1} parent=11 // pred_check
          %p422 = pneg %p201
        $region38: #{encoder_forward.1} parent=11 // pred_check_branch
          %424 = sbr.rel (%p422) target = $region40
        $region39: #{encoder_forward.1} parent=11 // pred_region
          _
        $region40: #{encoder_forward.1} parent=11 // pred_fallthru
          _
        // Predicated region
        $region41: #{encoder_forward.1} parent=11 // pred_check
          %p425 = pneg %p222
        $region42: #{encoder_forward.1} parent=11 // pred_check_branch
          %427 = sbr.rel (%p425) target = $region44
        $region43: #{encoder_forward.1} parent=11 // pred_region
          _
        $region44: #{encoder_forward.1} parent=11 // pred_fallthru
          _
        // Predicated region
        $region45: #{encoder_forward.1} parent=11 // pred_check
          %p428 = pneg %p243
        $region46: #{encoder_forward.1} parent=11 // pred_check_branch
          %430 = sbr.rel (%p428) target = $region48
        $region47: #{encoder_forward.1} parent=11 // pred_region
          _
        $region48: #{encoder_forward.1} parent=11 // pred_fallthru
          _
        // Predicated region
        $region49: #{encoder_forward.1} parent=11 // pred_check
          %p431 = pneg %p264
        $region50: #{encoder_forward.1} parent=11 // pred_check_branch
          %433 = sbr.rel (%p431) target = $region52
        $region51: #{encoder_forward.1} parent=11 // pred_region
          _
        $region52: #{encoder_forward.1} parent=11 // pred_fallthru
          _
        // Predicated region
        $region53: #{encoder_forward.1} parent=11 // pred_check
          %p434 = pneg %p285
        $region54: #{encoder_forward.1} parent=11 // pred_check_branch
          %436 = sbr.rel (%p434) target = $region56
        $region55: #{encoder_forward.1} parent=11 // pred_region
          _
        $region56: #{encoder_forward.1} parent=11 // pred_fallthru
          _
      $region12: #{encoder_forward.1} parent=5 // pred_fallthru
        _
      %p437 = scmp.lt.s32.totalorder %s28, 2
      // Predicated region
      $region57: #{encoder_forward.1} parent=5 // pred_check
        %p438 = pneg %p437
      $region58: #{encoder_forward.1} parent=5 // pred_check_branch
        %440 = sbr.rel (%p438) target = $region60
      $region59: #{encoder_forward.1} parent=5 // pred_region
        // Predicated region
        $region61: #{encoder_forward.1} parent=59 // pred_check
          %p441 = pneg %p48
        $region62: #{encoder_forward.1} parent=59 // pred_check_branch
          %443 = sbr.rel (%p441) target = $region64
        $region63: #{encoder_forward.1} parent=59 // pred_region
          %p444 = scmp.lt.s32.totalorder %s28, 1
          %s445 = scalar_select %p444, %s28, 1
          %s446 = smul.addr %s445, 4
          %s447 = smul.addr %s446, 8
          %s448 = scalar_lea.vmem %s0, %s447
        $region64: #{encoder_forward.1} parent=59 // pred_fallthru
          _
        // Predicated region
        $region65: #{encoder_forward.1} parent=59 // pred_check
          %p449 = pneg %p305
        $region66: #{encoder_forward.1} parent=59 // pred_check_branch
          %451 = sbr.rel (%p449) target = $region68
        $region67: #{encoder_forward.1} parent=59 // pred_region
          %p452 = scmp.lt.s32.totalorder %s28, 1
          %s453 = scalar_select %p452, %s28, 1
          %s454 = scalar_lea.vmem %s12, %s453
        $region68: #{encoder_forward.1} parent=59 // pred_fallthru
          _
      $region60: #{encoder_forward.1} parent=5 // pred_fallthru
        _
      %p455 = scmp.le.s32.totalorder 1, %s28
      %p456 = scmp.lt.s32.totalorder %s28, 3
      %p457 = pnand %p455, %p456
      %p458 = pneg %p457
      // Predicated region
      $region69: #{encoder_forward.1} parent=5 // pred_check
        _
      $region70: #{encoder_forward.1} parent=5 // pred_check_branch
        %460 = sbr.rel (%p457) target = $region72
      $region71: #{encoder_forward.1} parent=5 // pred_region
        %s461 = ssub.s32 %s28, 1
        %p462 = scmp.lt.s32.totalorder %s33, 1
        %s463 = scalar_select %p462, %s33, 1
        %s464 = smul.addr %s463, 4
        %s465 = smul.addr %s464, 8
        %s466 = scalar_lea.vmem %s0, %s465
        %p467 = pneg %p54
        %p468 = pneg %p51
        %p469 = pneg %p75
        %p470 = pneg %p72
        %p471 = pneg %p96
        %p472 = pneg %p93
        %p473 = pneg %p117
        %p474 = pneg %p114
        %p475 = pneg %p138
        %p476 = pneg %p135
        %p477 = pneg %p159
        %p478 = pneg %p156
        %p479 = pneg %p180
        %p480 = pneg %p177
        %p481 = pneg %p201
        %p482 = pneg %p198
        %p483 = pneg %p222
        %p484 = pneg %p219
        %p485 = pneg %p243
        %p486 = pneg %p240
        %p487 = pneg %p264
        %p488 = pneg %p261
        %p489 = pneg %p285
        %p490 = pneg %p282
        %p491 = scmp.lt.s32.totalorder %s33, 1
        %s492 = scalar_select %p491, %s33, 1
        %s493 = scalar_lea.vmem %s12, %s492
        %p494 = pneg %p311
        %p495 = pneg %p308
        %p496 = pneg %p337
        %p497 = pneg %p334
        %s498 = sand.u32 %s324, 1
        %s499 = scalar_lea.sflag [#allocation3], %s498
        %s500 = sand.u32 %s324, 1
        %s501 = scalar_lea.vmem [#allocation2], %s500
        %p502 = pneg %p363
        %p503 = pneg %p360
        %s504 = sand.u32 %s33, 1
        %s505 = scalar_lea.sflag [#allocation5], %s504
        %s506 = sand.u32 %s350, 1
        %s507 = scalar_lea.vmem [#allocation4], %s506
        %p508 = pneg %p389
        %p509 = pneg %p386
        %s510 = sand.u32 %s33, 1
        %s511 = scalar_lea.sflag [#allocation5], %s510
        %s512 = sand.u32 %s376, 1
        %s513 = scalar_lea.vmem [#allocation6], %s512
        %p514 = scmp.lt.s32.totalorder %s33, 1
        %s515 = scalar_select %p514, %s33, 1
        %s516 = smul.addr %s515, 4
        %s517 = smul.addr %s516, 8
        %s518 = scalar_lea.vmem %s0, %s517
        %p519 = scmp.lt.s32.totalorder %s33, 1
        %s520 = scalar_select %p519, %s33, 1
        %s521 = scalar_lea.vmem %s12, %s520
        %v522 = vld [vmem:[%s518] sm:$0xff]
        %v523 = vld [vmem:[%s518 + $0x8] sm:$0xff]
        %v524 = vld [vmem:[%s518 + $0x10] sm:$0xff]
        %v525 = vld [vmem:[%s518 + $0x18] sm:$0xff]
        %v526 = vld [vmem:[%s1] sm:$0xff]
        %v527 = vld [vmem:[%s1 + $0x8] sm:$0xff]
        %vm528 = vcmask 261120
        %v530 = vsel %vm528, %v526, 0
        %v533 = vsel %vm528, %v527, 0
        %535 = vmatprep.subr.mxu0 0.0
        %536 = vmatpush1.msra.mxu0 0.0
        %537 = vmatprep.subr.mxu0 0.0
        %538 = vmatpush1.msra.mxu0 0.0
        %539 = vmatprep.subr.mxu0 0.0
        %540 = vmatpush1.msra.mxu0 0.0
        %541 = vmatprep.subr.mxu0 0.0
        %542 = vmatpush1.msra.mxu0 0.0
        %543 = vmatprep.subr.mxu0 0.0
        %544 = vmatpush1.msra.mxu0 0.0
        %545 = vmatprep.subr.mxu0 0.0
        %546 = vmatpush1.msra.mxu0 0.0
        %547 = vmatprep.subr.mxu0 0.0
        %548 = vmatpush1.msra.mxu0 0.0
        %549 = vmatprep.subr.mxu0 0.0
        %550 = vmatpush1.msra.mxu0 0.0
        %551 = vmatprep.subr.mxu0 0.0
        %552 = vmatpush1.msra.mxu0 0.0
        %553 = vmatprep.subr.mxu0 0.0
        %554 = vmatpush1.msra.mxu0 0.0
        %555 = vmatprep.subr.mxu0 0.0
        %556 = vmatpush1.msra.mxu0 0.0
        %557 = vmatprep.subr.mxu0 0.0
        %558 = vmatpush1.msra.mxu0 0.0
        %559 = vmatprep.subr.mxu0 0.0
        %560 = vmatpush1.msra.mxu0 %v525
        %561 = vmatprep.subr.mxu0 0.0
        %562 = vmatpush1.msra.mxu0 %v524
        %563 = vmatprep.subr.mxu0 0.0
        %564 = vmatpush1.msra.mxu0 %v523
        %565 = vmatprep.subr.mxu0 0.0
        %566 = vmatpush1.msra.mxu0 %v522
        %567 = vmatprep.subr.mxu0 0.0
        %568 = vmatpush2.msra.mxu0 0.0
        %569 = vmatprep.subr.mxu0 0.0
        %570 = vmatpush2.msra.mxu0 0.0
        %571 = vmatprep.subr.mxu0 0.0
        %572 = vmatpush2.msra.mxu0 0.0
        %573 = vmatprep.subr.mxu0 0.0
        %574 = vmatpush2.msra.mxu0 0.0
        %575 = vmatprep.subr.mxu0 0.0
        %576 = vmatpush2.msra.mxu0 0.0
        %577 = vmatprep.subr.mxu0 0.0
        %578 = vmatpush2.msra.mxu0 0.0
        %579 = vmatprep.subr.mxu0 0.0
        %580 = vmatpush2.msra.mxu0 0.0
        %581 = vmatprep.subr.mxu0 0.0
        %582 = vmatpush2.msra.mxu0 0.0
        %583 = vmatprep.subr.mxu0 0.0
        %584 = vmatpush2.msra.mxu0 0.0
        %585 = vmatprep.subr.mxu0 0.0
        %586 = vmatpush2.msra.mxu0 0.0
        %587 = vmatprep.subr.mxu0 0.0
        %588 = vmatpush2.msra.mxu0 0.0
        %589 = vmatprep.subr.mxu0 0.0
        %590 = vmatpush2.msra.mxu0 0.0
        %591 = vmatprep.subr.mxu0 0.0
        %592 = vmatpush2.msra.mxu0 0.0
        %593 = vmatprep.subr.mxu0 0.0
        %594 = vmatpush2.msra.mxu0 0.0
        %595 = vmatprep.subr.mxu0 0.0
        %596 = vmatpush2.msra.mxu0 0.0
        %597 = vmatprep.subr.mxu0 0.0
        %598 = vmatpush2.msra.mxu0 0.0
        %599 = vmatprep.mubr.f32.mxu0 0.0
        %600 = vmatmul.mubr.f32.gmra.mxu0 %v530
        %v601 = vpop.f32.mrf.mxu0
        %v602 = vadd.f32 0.0, %v601
        %v603 = vpop.f32.mrf.mxu0
        %604 = vmatprep.mubr.f32.mxu0 0.0
        %605 = vmatmul.mubr.f32.gmra.mxu0 %v533
        %v606 = vpop.f32.mrf.mxu0
        %v607 = vadd.f32 0.0, %v606
        %v608 = vpop.f32.mrf.mxu0
        %609 = vdwg.mxu0
        %v610 = vld [vmem:[%s2] sm:$0xff]
        %v611 = vld [vmem:[%s2 + $0x8] sm:$0xff]
        %v612 = vld [vmem:[%s2 + $0x10] sm:$0xff]
        %v613 = vld [vmem:[%s2 + $0x18] sm:$0xff]
        %v614 = vld [vmem:[%s2 + $0x20] sm:$0xff]
        %v615 = vld [vmem:[%s2 + $0x28] sm:$0xff]
        %v616 = vld [vmem:[%s2 + $0x30] sm:$0xff]
        %v617 = vld [vmem:[%s2 + $0x38] sm:$0xff]
        %v618 = vld [vmem:[%s2 + $0x40] sm:$0xff]
        %v619 = vld [vmem:[%s2 + $0x48] sm:$0xff]
        %v620 = vld [vmem:[%s2 + $0x50] sm:$0xff]
        %v621 = vld [vmem:[%s2 + $0x58] sm:$0xff]
        %s622 = scalar_lea.vmem %s1, 16
        %v623 = vld [vmem:[%s622] sm:$0xff]
        %v624 = vld [vmem:[%s622 + $0x8] sm:$0xff]
        %v626 = vsel %vm528, %v623, 0
        %v629 = vsel %vm528, %v624, 0
        %631 = vmatprep.subr.mxu0 0.0
        %632 = vmatpush1.msra.mxu0 0.0
        %633 = vmatprep.subr.mxu0 0.0
        %634 = vmatpush1.msra.mxu0 0.0
        %635 = vmatprep.subr.mxu0 0.0
        %636 = vmatpush1.msra.mxu0 0.0
        %637 = vmatprep.subr.mxu0 0.0
        %638 = vmatpush1.msra.mxu0 0.0
        %639 = vmatprep.subr.mxu0 0.0
        %640 = vmatpush1.msra.mxu0 0.0
        %641 = vmatprep.subr.mxu0 0.0
        %642 = vmatpush1.msra.mxu0 0.0
        %643 = vmatprep.subr.mxu0 0.0
        %644 = vmatpush1.msra.mxu0 0.0
        %645 = vmatprep.subr.mxu0 0.0
        %646 = vmatpush1.msra.mxu0 0.0
        %647 = vmatprep.subr.mxu0 0.0
        %648 = vmatpush1.msra.mxu0 0.0
        %649 = vmatprep.subr.mxu0 0.0
        %650 = vmatpush1.msra.mxu0 0.0
        %651 = vmatprep.subr.mxu0 0.0
        %652 = vmatpush1.msra.mxu0 0.0
        %653 = vmatprep.subr.mxu0 0.0
        %654 = vmatpush1.msra.mxu0 0.0
        %655 = vmatprep.subr.mxu0 0.0
        %656 = vmatpush1.msra.mxu0 %v525
        %657 = vmatprep.subr.mxu0 0.0
        %658 = vmatpush1.msra.mxu0 %v524
        %659 = vmatprep.subr.mxu0 0.0
        %660 = vmatpush1.msra.mxu0 %v523
        %661 = vmatprep.subr.mxu0 0.0
        %662 = vmatpush1.msra.mxu0 %v522
        %663 = vmatprep.subr.mxu0 0.0
        %664 = vmatpush2.msra.mxu0 0.0
        %665 = vmatprep.subr.mxu0 0.0
        %666 = vmatpush2.msra.mxu0 0.0
        %667 = vmatprep.subr.mxu0 0.0
        %668 = vmatpush2.msra.mxu0 0.0
        %669 = vmatprep.subr.mxu0 0.0
        %670 = vmatpush2.msra.mxu0 0.0
        %671 = vmatprep.subr.mxu0 0.0
        %672 = vmatpush2.msra.mxu0 0.0
        %673 = vmatprep.subr.mxu0 0.0
        %674 = vmatpush2.msra.mxu0 0.0
        %675 = vmatprep.subr.mxu0 0.0
        %676 = vmatpush2.msra.mxu0 0.0
        %677 = vmatprep.subr.mxu0 0.0
        %678 = vmatpush2.msra.mxu0 0.0
        %679 = vmatprep.subr.mxu0 0.0
        %680 = vmatpush2.msra.mxu0 0.0
        %681 = vmatprep.subr.mxu0 0.0
        %682 = vmatpush2.msra.mxu0 0.0
        %683 = vmatprep.subr.mxu0 0.0
        %684 = vmatpush2.msra.mxu0 0.0
        %685 = vmatprep.subr.mxu0 0.0
        %686 = vmatpush2.msra.mxu0 0.0
        %687 = vmatprep.subr.mxu0 0.0
        %688 = vmatpush2.msra.mxu0 0.0
        %689 = vmatprep.subr.mxu0 0.0
        %690 = vmatpush2.msra.mxu0 0.0
        %691 = vmatprep.subr.mxu0 0.0
        %692 = vmatpush2.msra.mxu0 0.0
        %693 = vmatprep.subr.mxu0 0.0
        %694 = vmatpush2.msra.mxu0 0.0
        %695 = vmatprep.mubr.f32.mxu0 0.0
        %696 = vmatmul.mubr.f32.gmra.mxu0 %v626
        %v697 = vpop.f32.mrf.mxu0
        %v698 = vadd.f32 0.0, %v697
        %v699 = vpop.f32.mrf.mxu0
        %700 = vmatprep.mubr.f32.mxu0 0.0
        %701 = vmatmul.mubr.f32.gmra.mxu0 %v629
        %v702 = vpop.f32.mrf.mxu0
        %v703 = vadd.f32 0.0, %v702
        %v704 = vpop.f32.mrf.mxu0
        %705 = vdwg.mxu0
        %s706 = scalar_lea.vmem %s2, 96
        %v707 = vld [vmem:[%s706] sm:$0xff]
        %v708 = vld [vmem:[%s706 + $0x8] sm:$0xff]
        %v709 = vld [vmem:[%s706 + $0x10] sm:$0xff]
        %v710 = vld [vmem:[%s706 + $0x18] sm:$0xff]
        %v711 = vld [vmem:[%s706 + $0x20] sm:$0xff]
        %v712 = vld [vmem:[%s706 + $0x28] sm:$0xff]
        %v713 = vld [vmem:[%s706 + $0x30] sm:$0xff]
        %v714 = vld [vmem:[%s706 + $0x38] sm:$0xff]
        %v715 = vld [vmem:[%s706 + $0x40] sm:$0xff]
        %v716 = vld [vmem:[%s706 + $0x48] sm:$0xff]
        %v717 = vld [vmem:[%s706 + $0x50] sm:$0xff]
        %v718 = vld [vmem:[%s706 + $0x58] sm:$0xff]
        %vm719 = vcmask 785408
        %v721 = vsel %vm719, %v698, 0
        %v724 = vsel %vm719, %v703, 0
        %726 = vmatprep.subr.mxu0 0.0
        %727 = vmatpush1.msra.mxu0 0.0
        %728 = vmatprep.subr.mxu0 0.0
        %729 = vmatpush1.msra.mxu0 0.0
        %730 = vmatprep.subr.mxu0 0.0
        %731 = vmatpush1.msra.mxu0 0.0
        %732 = vmatprep.subr.mxu0 0.0
        %733 = vmatpush1.msra.mxu0 0.0
        %734 = vmatprep.subr.mxu0 0.0
        %735 = vmatpush1.msra.mxu0 %v718
        %736 = vmatprep.subr.mxu0 0.0
        %737 = vmatpush1.msra.mxu0 %v717
        %738 = vmatprep.subr.mxu0 0.0
        %739 = vmatpush1.msra.mxu0 %v716
        %740 = vmatprep.subr.mxu0 0.0
        %741 = vmatpush1.msra.mxu0 %v715
        %742 = vmatprep.subr.mxu0 0.0
        %743 = vmatpush1.msra.mxu0 %v714
        %744 = vmatprep.subr.mxu0 0.0
        %745 = vmatpush1.msra.mxu0 %v713
        %746 = vmatprep.subr.mxu0 0.0
        %747 = vmatpush1.msra.mxu0 %v712
        %748 = vmatprep.subr.mxu0 0.0
        %749 = vmatpush1.msra.mxu0 %v711
        %750 = vmatprep.subr.mxu0 0.0
        %751 = vmatpush1.msra.mxu0 %v710
        %752 = vmatprep.subr.mxu0 0.0
        %753 = vmatpush1.msra.mxu0 %v709
        %754 = vmatprep.subr.mxu0 0.0
        %755 = vmatpush1.msra.mxu0 %v708
        %756 = vmatprep.subr.mxu0 0.0
        %757 = vmatpush1.msra.mxu0 %v707
        %758 = vmatprep.subr.mxu0 0.0
        %759 = vmatpush2.msra.mxu0 0.0
        %760 = vmatprep.subr.mxu0 0.0
        %761 = vmatpush2.msra.mxu0 0.0
        %762 = vmatprep.subr.mxu0 0.0
        %763 = vmatpush2.msra.mxu0 0.0
        %764 = vmatprep.subr.mxu0 0.0
        %765 = vmatpush2.msra.mxu0 0.0
        %766 = vmatprep.subr.mxu0 0.0
        %767 = vmatpush2.msra.mxu0 0.0
        %768 = vmatprep.subr.mxu0 0.0
        %769 = vmatpush2.msra.mxu0 0.0
        %770 = vmatprep.subr.mxu0 0.0
        %771 = vmatpush2.msra.mxu0 0.0
        %772 = vmatprep.subr.mxu0 0.0
        %773 = vmatpush2.msra.mxu0 0.0
        %774 = vmatprep.subr.mxu0 0.0
        %775 = vmatpush2.msra.mxu0 0.0
        %776 = vmatprep.subr.mxu0 0.0
        %777 = vmatpush2.msra.mxu0 0.0
        %778 = vmatprep.subr.mxu0 0.0
        %779 = vmatpush2.msra.mxu0 0.0
        %780 = vmatprep.subr.mxu0 0.0
        %781 = vmatpush2.msra.mxu0 0.0
        %782 = vmatprep.subr.mxu0 0.0
        %783 = vmatpush2.msra.mxu0 0.0
        %784 = vmatprep.subr.mxu0 0.0
        %785 = vmatpush2.msra.mxu0 0.0
        %786 = vmatprep.subr.mxu0 0.0
        %787 = vmatpush2.msra.mxu0 0.0
        %788 = vmatprep.subr.mxu0 0.0
        %789 = vmatpush2.msra.mxu0 0.0
        %790 = vmatprep.mubr.f32.mxu0 0.0
        %791 = vmatmul.mubr.f32.gmra.mxu0 %v721
        %v792 = vpop.f32.mrf.mxu0
        %v793 = vadd.f32 0.0, %v792
        %v794 = vpop.f32.mrf.mxu0
        %795 = vmatprep.mubr.f32.mxu0 0.0
        %796 = vmatmul.mubr.f32.gmra.mxu0 %v724
        %v797 = vpop.f32.mrf.mxu0
        %v798 = vadd.f32 0.0, %v797
        %v799 = vpop.f32.mrf.mxu0
        %800 = vdwg.mxu0
        %v802 = vsel %vm719, %v602, 0
        %v805 = vsel %vm719, %v607, 0
        %807 = vmatprep.subr.mxu0 0.0
        %808 = vmatpush1.msra.mxu0 0.0
        %809 = vmatprep.subr.mxu0 0.0
        %810 = vmatpush1.msra.mxu0 0.0
        %811 = vmatprep.subr.mxu0 0.0
        %812 = vmatpush1.msra.mxu0 0.0
        %813 = vmatprep.subr.mxu0 0.0
        %814 = vmatpush1.msra.mxu0 0.0
        %815 = vmatprep.subr.mxu0 0.0
        %816 = vmatpush1.msra.mxu0 %v621
        %817 = vmatprep.subr.mxu0 0.0
        %818 = vmatpush1.msra.mxu0 %v620
        %819 = vmatprep.subr.mxu0 0.0
        %820 = vmatpush1.msra.mxu0 %v619
        %821 = vmatprep.subr.mxu0 0.0
        %822 = vmatpush1.msra.mxu0 %v618
        %823 = vmatprep.subr.mxu0 0.0
        %824 = vmatpush1.msra.mxu0 %v617
        %825 = vmatprep.subr.mxu0 0.0
        %826 = vmatpush1.msra.mxu0 %v616
        %827 = vmatprep.subr.mxu0 0.0
        %828 = vmatpush1.msra.mxu0 %v615
        %829 = vmatprep.subr.mxu0 0.0
        %830 = vmatpush1.msra.mxu0 %v614
        %831 = vmatprep.subr.mxu0 0.0
        %832 = vmatpush1.msra.mxu0 %v613
        %833 = vmatprep.subr.mxu0 0.0
        %834 = vmatpush1.msra.mxu0 %v612
        %835 = vmatprep.subr.mxu0 0.0
        %836 = vmatpush1.msra.mxu0 %v611
        %837 = vmatprep.subr.mxu0 0.0
        %838 = vmatpush1.msra.mxu0 %v610
        %839 = vmatprep.subr.mxu0 0.0
        %840 = vmatpush2.msra.mxu0 0.0
        %841 = vmatprep.subr.mxu0 0.0
        %842 = vmatpush2.msra.mxu0 0.0
        %843 = vmatprep.subr.mxu0 0.0
        %844 = vmatpush2.msra.mxu0 0.0
        %845 = vmatprep.subr.mxu0 0.0
        %846 = vmatpush2.msra.mxu0 0.0
        %847 = vmatprep.subr.mxu0 0.0
        %848 = vmatpush2.msra.mxu0 0.0
        %849 = vmatprep.subr.mxu0 0.0
        %850 = vmatpush2.msra.mxu0 0.0
        %851 = vmatprep.subr.mxu0 0.0
        %852 = vmatpush2.msra.mxu0 0.0
        %853 = vmatprep.subr.mxu0 0.0
        %854 = vmatpush2.msra.mxu0 0.0
        %855 = vmatprep.subr.mxu0 0.0
        %856 = vmatpush2.msra.mxu0 0.0
        %857 = vmatprep.subr.mxu0 0.0
        %858 = vmatpush2.msra.mxu0 0.0
        %859 = vmatprep.subr.mxu0 0.0
        %860 = vmatpush2.msra.mxu0 0.0
        %861 = vmatprep.subr.mxu0 0.0
        %862 = vmatpush2.msra.mxu0 0.0
        %863 = vmatprep.subr.mxu0 0.0
        %864 = vmatpush2.msra.mxu0 0.0
        %865 = vmatprep.subr.mxu0 0.0
        %866 = vmatpush2.msra.mxu0 0.0
        %867 = vmatprep.subr.mxu0 0.0
        %868 = vmatpush2.msra.mxu0 0.0
        %869 = vmatprep.subr.mxu0 0.0
        %870 = vmatpush2.msra.mxu0 0.0
        %871 = vmatprep.mubr.f32.mxu0 0.0
        %872 = vmatmul.mubr.f32.gmra.mxu0 %v802
        %v873 = vpop.f32.mrf.mxu0
        %v874 = vadd.f32 %v793, %v873
        %v875 = vpop.f32.mrf.mxu0
        %876 = vmatprep.mubr.f32.mxu0 0.0
        %877 = vmatmul.mubr.f32.gmra.mxu0 %v805
        %v878 = vpop.f32.mrf.mxu0
        %v879 = vadd.f32 %v798, %v878
        %v880 = vpop.f32.mrf.mxu0
        %881 = vdwg.mxu0
        %s882 = scalar_lea.vmem %s1, 32
        %v883 = vld [vmem:[%s882] sm:$0xff]
        %v884 = vld [vmem:[%s882 + $0x8] sm:$0xff]
        %v886 = vsel %vm528, %v883, 0
        %v889 = vsel %vm528, %v884, 0
        %891 = vmatprep.subr.mxu0 0.0
        %892 = vmatpush1.msra.mxu0 0.0
        %893 = vmatprep.subr.mxu0 0.0
        %894 = vmatpush1.msra.mxu0 0.0
        %895 = vmatprep.subr.mxu0 0.0
        %896 = vmatpush1.msra.mxu0 0.0
        %897 = vmatprep.subr.mxu0 0.0
        %898 = vmatpush1.msra.mxu0 0.0
        %899 = vmatprep.subr.mxu0 0.0
        %900 = vmatpush1.msra.mxu0 0.0
        %901 = vmatprep.subr.mxu0 0.0
        %902 = vmatpush1.msra.mxu0 0.0
        %903 = vmatprep.subr.mxu0 0.0
        %904 = vmatpush1.msra.mxu0 0.0
        %905 = vmatprep.subr.mxu0 0.0
        %906 = vmatpush1.msra.mxu0 0.0
        %907 = vmatprep.subr.mxu0 0.0
        %908 = vmatpush1.msra.mxu0 0.0
        %909 = vmatprep.subr.mxu0 0.0
        %910 = vmatpush1.msra.mxu0 0.0
        %911 = vmatprep.subr.mxu0 0.0
        %912 = vmatpush1.msra.mxu0 0.0
        %913 = vmatprep.subr.mxu0 0.0
        %914 = vmatpush1.msra.mxu0 0.0
        %915 = vmatprep.subr.mxu0 0.0
        %916 = vmatpush1.msra.mxu0 %v525
        %917 = vmatprep.subr.mxu0 0.0
        %918 = vmatpush1.msra.mxu0 %v524
        %919 = vmatprep.subr.mxu0 0.0
        %920 = vmatpush1.msra.mxu0 %v523
        %921 = vmatprep.subr.mxu0 0.0
        %922 = vmatpush1.msra.mxu0 %v522
        %923 = vmatprep.subr.mxu0 0.0
        %924 = vmatpush2.msra.mxu0 0.0
        %925 = vmatprep.subr.mxu0 0.0
        %926 = vmatpush2.msra.mxu0 0.0
        %927 = vmatprep.subr.mxu0 0.0
        %928 = vmatpush2.msra.mxu0 0.0
        %929 = vmatprep.subr.mxu0 0.0
        %930 = vmatpush2.msra.mxu0 0.0
        %931 = vmatprep.subr.mxu0 0.0
        %932 = vmatpush2.msra.mxu0 0.0
        %933 = vmatprep.subr.mxu0 0.0
        %934 = vmatpush2.msra.mxu0 0.0
        %935 = vmatprep.subr.mxu0 0.0
        %936 = vmatpush2.msra.mxu0 0.0
        %937 = vmatprep.subr.mxu0 0.0
        %938 = vmatpush2.msra.mxu0 0.0
        %939 = vmatprep.subr.mxu0 0.0
        %940 = vmatpush2.msra.mxu0 0.0
        %941 = vmatprep.subr.mxu0 0.0
        %942 = vmatpush2.msra.mxu0 0.0
        %943 = vmatprep.subr.mxu0 0.0
        %944 = vmatpush2.msra.mxu0 0.0
        %945 = vmatprep.subr.mxu0 0.0
        %946 = vmatpush2.msra.mxu0 0.0
        %947 = vmatprep.subr.mxu0 0.0
        %948 = vmatpush2.msra.mxu0 0.0
        %949 = vmatprep.subr.mxu0 0.0
        %950 = vmatpush2.msra.mxu0 0.0
        %951 = vmatprep.subr.mxu0 0.0
        %952 = vmatpush2.msra.mxu0 0.0
        %953 = vmatprep.subr.mxu0 0.0
        %954 = vmatpush2.msra.mxu0 0.0
        %955 = vmatprep.mubr.f32.mxu0 0.0
        %956 = vmatmul.mubr.f32.gmra.mxu0 %v886
        %v957 = vpop.f32.mrf.mxu0
        %v958 = vadd.f32 0.0, %v957
        %v959 = vpop.f32.mrf.mxu0
        %960 = vmatprep.mubr.f32.mxu0 0.0
        %961 = vmatmul.mubr.f32.gmra.mxu0 %v889
        %v962 = vpop.f32.mrf.mxu0
        %v963 = vadd.f32 0.0, %v962
        %v964 = vpop.f32.mrf.mxu0
        %965 = vdwg.mxu0
        %s966 = scalar_lea.vmem %s2, 192
        %v967 = vld [vmem:[%s966] sm:$0xff]
        %v968 = vld [vmem:[%s966 + $0x8] sm:$0xff]
        %v969 = vld [vmem:[%s966 + $0x10] sm:$0xff]
        %v970 = vld [vmem:[%s966 + $0x18] sm:$0xff]
        %v971 = vld [vmem:[%s966 + $0x20] sm:$0xff]
        %v972 = vld [vmem:[%s966 + $0x28] sm:$0xff]
        %v973 = vld [vmem:[%s966 + $0x30] sm:$0xff]
        %v974 = vld [vmem:[%s966 + $0x38] sm:$0xff]
        %v975 = vld [vmem:[%s966 + $0x40] sm:$0xff]
        %v976 = vld [vmem:[%s966 + $0x48] sm:$0xff]
        %v977 = vld [vmem:[%s966 + $0x50] sm:$0xff]
        %v978 = vld [vmem:[%s966 + $0x58] sm:$0xff]
        %v980 = vsel %vm719, %v958, 0
        %v983 = vsel %vm719, %v963, 0
        %985 = vmatprep.subr.mxu0 0.0
        %986 = vmatpush1.msra.mxu0 0.0
        %987 = vmatprep.subr.mxu0 0.0
        %988 = vmatpush1.msra.mxu0 0.0
        %989 = vmatprep.subr.mxu0 0.0
        %990 = vmatpush1.msra.mxu0 0.0
        %991 = vmatprep.subr.mxu0 0.0
        %992 = vmatpush1.msra.mxu0 0.0
        %993 = vmatprep.subr.mxu0 0.0
        %994 = vmatpush1.msra.mxu0 %v978
        %995 = vmatprep.subr.mxu0 0.0
        %996 = vmatpush1.msra.mxu0 %v977
        %997 = vmatprep.subr.mxu0 0.0
        %998 = vmatpush1.msra.mxu0 %v976
        %999 = vmatprep.subr.mxu0 0.0
        %1000 = vmatpush1.msra.mxu0 %v975
        %1001 = vmatprep.subr.mxu0 0.0
        %1002 = vmatpush1.msra.mxu0 %v974
        %1003 = vmatprep.subr.mxu0 0.0
        %1004 = vmatpush1.msra.mxu0 %v973
        %1005 = vmatprep.subr.mxu0 0.0
        %1006 = vmatpush1.msra.mxu0 %v972
        %1007 = vmatprep.subr.mxu0 0.0
        %1008 = vmatpush1.msra.mxu0 %v971
        %1009 = vmatprep.subr.mxu0 0.0
        %1010 = vmatpush1.msra.mxu0 %v970
        %1011 = vmatprep.subr.mxu0 0.0
        %1012 = vmatpush1.msra.mxu0 %v969
        %1013 = vmatprep.subr.mxu0 0.0
        %1014 = vmatpush1.msra.mxu0 %v968
        %1015 = vmatprep.subr.mxu0 0.0
        %1016 = vmatpush1.msra.mxu0 %v967
        %1017 = vmatprep.subr.mxu0 0.0
        %1018 = vmatpush2.msra.mxu0 0.0
        %1019 = vmatprep.subr.mxu0 0.0
        %1020 = vmatpush2.msra.mxu0 0.0
        %1021 = vmatprep.subr.mxu0 0.0
        %1022 = vmatpush2.msra.mxu0 0.0
        %1023 = vmatprep.subr.mxu0 0.0
        %1024 = vmatpush2.msra.mxu0 0.0
        %1025 = vmatprep.subr.mxu0 0.0
        %1026 = vmatpush2.msra.mxu0 0.0
        %1027 = vmatprep.subr.mxu0 0.0
        %1028 = vmatpush2.msra.mxu0 0.0
        %1029 = vmatprep.subr.mxu0 0.0
        %1030 = vmatpush2.msra.mxu0 0.0
        %1031 = vmatprep.subr.mxu0 0.0
        %1032 = vmatpush2.msra.mxu0 0.0
        %1033 = vmatprep.subr.mxu0 0.0
        %1034 = vmatpush2.msra.mxu0 0.0
        %1035 = vmatprep.subr.mxu0 0.0
        %1036 = vmatpush2.msra.mxu0 0.0
        %1037 = vmatprep.subr.mxu0 0.0
        %1038 = vmatpush2.msra.mxu0 0.0
        %1039 = vmatprep.subr.mxu0 0.0
        %1040 = vmatpush2.msra.mxu0 0.0
        %1041 = vmatprep.subr.mxu0 0.0
        %1042 = vmatpush2.msra.mxu0 0.0
        %1043 = vmatprep.subr.mxu0 0.0
        %1044 = vmatpush2.msra.mxu0 0.0
        %1045 = vmatprep.subr.mxu0 0.0
        %1046 = vmatpush2.msra.mxu0 0.0
        %1047 = vmatprep.subr.mxu0 0.0
        %1048 = vmatpush2.msra.mxu0 0.0
        %1049 = vmatprep.mubr.f32.mxu0 0.0
        %1050 = vmatmul.mubr.f32.gmra.mxu0 %v980
        %v1051 = vpop.f32.mrf.mxu0
        %v1052 = vadd.f32 0.0, %v1051
        %v1053 = vpop.f32.mrf.mxu0
        %1054 = vmatprep.mubr.f32.mxu0 0.0
        %1055 = vmatmul.mubr.f32.gmra.mxu0 %v983
        %v1056 = vpop.f32.mrf.mxu0
        %v1057 = vadd.f32 0.0, %v1056
        %v1058 = vpop.f32.mrf.mxu0
        %1059 = vdwg.mxu0
        %v1060 = vadd.f32 %v874, %v1052
        %v1061 = vadd.f32 %v879, %v1057
        %v1062 = vld [vmem:[%s3] sm:$0x1]
        %v1064 = vlaneseq
        %v1065 = vshrl.u32 %v1064, 7
        %v1066 = vsub.s32 0, %v1065
        %v1067 = vrot.slane %v1062, %v1066
        %v1069 = vadd.f32 %v1060, %v1067
        %v1070 = vadd.f32 %v1061, %v1067
        %v1071 = vmax.f32 %v1069, 0.0
        %v1072 = vmax.f32 %v1070, 0.0
        %v1073 = vld [vmem:[%s4] sm:$0xff]
        %vm1074 = vcmask 130048
        %v1076 = vsel %vm1074, %v1073, 0
        %1078 = vmatprep.subr.mxu0 0.0
        %1079 = vmatpush1.msra.mxu0 0.0
        %1080 = vmatprep.subr.mxu0 0.0
        %1081 = vmatpush1.msra.mxu0 0.0
        %1082 = vmatprep.subr.mxu0 0.0
        %1083 = vmatpush1.msra.mxu0 0.0
        %1084 = vmatprep.subr.mxu0 0.0
        %1085 = vmatpush1.msra.mxu0 0.0
        %1086 = vmatprep.subr.mxu0 0.0
        %1087 = vmatpush1.msra.mxu0 0.0
        %1088 = vmatprep.subr.mxu0 0.0
        %1089 = vmatpush1.msra.mxu0 0.0
        %1090 = vmatprep.subr.mxu0 0.0
        %1091 = vmatpush1.msra.mxu0 0.0
        %1092 = vmatprep.subr.mxu0 0.0
        %1093 = vmatpush1.msra.mxu0 0.0
        %1094 = vmatprep.subr.mxu0 0.0
        %1095 = vmatpush1.msra.mxu0 0.0
        %1096 = vmatprep.subr.mxu0 0.0
        %1097 = vmatpush1.msra.mxu0 0.0
        %1098 = vmatprep.subr.mxu0 0.0
        %1099 = vmatpush1.msra.mxu0 0.0
        %1100 = vmatprep.subr.mxu0 0.0
        %1101 = vmatpush1.msra.mxu0 0.0
        %1102 = vmatprep.subr.mxu0 0.0
        %1103 = vmatpush1.msra.mxu0 0.0
        %1104 = vmatprep.subr.mxu0 0.0
        %1105 = vmatpush1.msra.mxu0 0.0
        %1106 = vmatprep.subr.mxu0 0.0
        %1107 = vmatpush1.msra.mxu0 %v1072
        %1108 = vmatprep.subr.mxu0 0.0
        %1109 = vmatpush1.msra.mxu0 %v1071
        %1110 = vmatprep.subr.mxu0 0.0
        %1111 = vmatpush2.msra.mxu0 0.0
        %1112 = vmatprep.subr.mxu0 0.0
        %1113 = vmatpush2.msra.mxu0 0.0
        %1114 = vmatprep.subr.mxu0 0.0
        %1115 = vmatpush2.msra.mxu0 0.0
        %1116 = vmatprep.subr.mxu0 0.0
        %1117 = vmatpush2.msra.mxu0 0.0
        %1118 = vmatprep.subr.mxu0 0.0
        %1119 = vmatpush2.msra.mxu0 0.0
        %1120 = vmatprep.subr.mxu0 0.0
        %1121 = vmatpush2.msra.mxu0 0.0
        %1122 = vmatprep.subr.mxu0 0.0
        %1123 = vmatpush2.msra.mxu0 0.0
        %1124 = vmatprep.subr.mxu0 0.0
        %1125 = vmatpush2.msra.mxu0 0.0
        %1126 = vmatprep.subr.mxu0 0.0
        %1127 = vmatpush2.msra.mxu0 0.0
        %1128 = vmatprep.subr.mxu0 0.0
        %1129 = vmatpush2.msra.mxu0 0.0
        %1130 = vmatprep.subr.mxu0 0.0
        %1131 = vmatpush2.msra.mxu0 0.0
        %1132 = vmatprep.subr.mxu0 0.0
        %1133 = vmatpush2.msra.mxu0 0.0
        %1134 = vmatprep.subr.mxu0 0.0
        %1135 = vmatpush2.msra.mxu0 0.0
        %1136 = vmatprep.subr.mxu0 0.0
        %1137 = vmatpush2.msra.mxu0 0.0
        %1138 = vmatprep.subr.mxu0 0.0
        %1139 = vmatpush2.msra.mxu0 0.0
        %1140 = vmatprep.subr.mxu0 0.0
        %1141 = vmatpush2.msra.mxu0 0.0
        %1142 = vmatprep.mubr.f32.mxu0 0.0
        %1143 = vmatmul.mubr.f32.gmra.mxu0 %v1076
        %v1144 = vpop.f32.mrf.mxu0
        %v1145 = vadd.f32 0.0, %v1144
        %v1146 = vpop.f32.mrf.mxu0
        %1147 = vdwg.mxu0
        %v1148 = vld [vmem:[%s5] sm:$0xff]
        %v1149 = vld [vmem:[%s5 + $0x8] sm:$0xff]
        %v1150 = vld [vmem:[%s5 + $0x10] sm:$0xff]
        %v1151 = vld [vmem:[%s5 + $0x18] sm:$0xff]
        %s1152 = scalar_lea.vmem %s4, 8
        %v1153 = vld [vmem:[%s1152] sm:$0xff]
        %v1155 = vsel %vm1074, %v1153, 0
        %1157 = vmatprep.subr.mxu0 0.0
        %1158 = vmatpush1.msra.mxu0 0.0
        %1159 = vmatprep.subr.mxu0 0.0
        %1160 = vmatpush1.msra.mxu0 0.0
        %1161 = vmatprep.subr.mxu0 0.0
        %1162 = vmatpush1.msra.mxu0 0.0
        %1163 = vmatprep.subr.mxu0 0.0
        %1164 = vmatpush1.msra.mxu0 0.0
        %1165 = vmatprep.subr.mxu0 0.0
        %1166 = vmatpush1.msra.mxu0 0.0
        %1167 = vmatprep.subr.mxu0 0.0
        %1168 = vmatpush1.msra.mxu0 0.0
        %1169 = vmatprep.subr.mxu0 0.0
        %1170 = vmatpush1.msra.mxu0 0.0
        %1171 = vmatprep.subr.mxu0 0.0
        %1172 = vmatpush1.msra.mxu0 0.0
        %1173 = vmatprep.subr.mxu0 0.0
        %1174 = vmatpush1.msra.mxu0 0.0
        %1175 = vmatprep.subr.mxu0 0.0
        %1176 = vmatpush1.msra.mxu0 0.0
        %1177 = vmatprep.subr.mxu0 0.0
        %1178 = vmatpush1.msra.mxu0 0.0
        %1179 = vmatprep.subr.mxu0 0.0
        %1180 = vmatpush1.msra.mxu0 0.0
        %1181 = vmatprep.subr.mxu0 0.0
        %1182 = vmatpush1.msra.mxu0 0.0
        %1183 = vmatprep.subr.mxu0 0.0
        %1184 = vmatpush1.msra.mxu0 0.0
        %1185 = vmatprep.subr.mxu0 0.0
        %1186 = vmatpush1.msra.mxu0 %v1072
        %1187 = vmatprep.subr.mxu0 0.0
        %1188 = vmatpush1.msra.mxu0 %v1071
        %1189 = vmatprep.subr.mxu0 0.0
        %1190 = vmatpush2.msra.mxu0 0.0
        %1191 = vmatprep.subr.mxu0 0.0
        %1192 = vmatpush2.msra.mxu0 0.0
        %1193 = vmatprep.subr.mxu0 0.0
        %1194 = vmatpush2.msra.mxu0 0.0
        %1195 = vmatprep.subr.mxu0 0.0
        %1196 = vmatpush2.msra.mxu0 0.0
        %1197 = vmatprep.subr.mxu0 0.0
        %1198 = vmatpush2.msra.mxu0 0.0
        %1199 = vmatprep.subr.mxu0 0.0
        %1200 = vmatpush2.msra.mxu0 0.0
        %1201 = vmatprep.subr.mxu0 0.0
        %1202 = vmatpush2.msra.mxu0 0.0
        %1203 = vmatprep.subr.mxu0 0.0
        %1204 = vmatpush2.msra.mxu0 0.0
        %1205 = vmatprep.subr.mxu0 0.0
        %1206 = vmatpush2.msra.mxu0 0.0
        %1207 = vmatprep.subr.mxu0 0.0
        %1208 = vmatpush2.msra.mxu0 0.0
        %1209 = vmatprep.subr.mxu0 0.0
        %1210 = vmatpush2.msra.mxu0 0.0
        %1211 = vmatprep.subr.mxu0 0.0
        %1212 = vmatpush2.msra.mxu0 0.0
        %1213 = vmatprep.subr.mxu0 0.0
        %1214 = vmatpush2.msra.mxu0 0.0
        %1215 = vmatprep.subr.mxu0 0.0
        %1216 = vmatpush2.msra.mxu0 0.0
        %1217 = vmatprep.subr.mxu0 0.0
        %1218 = vmatpush2.msra.mxu0 0.0
        %1219 = vmatprep.subr.mxu0 0.0
        %1220 = vmatpush2.msra.mxu0 0.0
        %1221 = vmatprep.mubr.f32.mxu0 0.0
        %1222 = vmatmul.mubr.f32.gmra.mxu0 %v1155
        %v1223 = vpop.f32.mrf.mxu0
        %v1224 = vadd.f32 0.0, %v1223
        %v1225 = vpop.f32.mrf.mxu0
        %1226 = vdwg.mxu0
        %s1227 = scalar_lea.vmem %s5, 32
        %v1228 = vld [vmem:[%s1227] sm:$0xff]
        %v1229 = vld [vmem:[%s1227 + $0x8] sm:$0xff]
        %v1230 = vld [vmem:[%s1227 + $0x10] sm:$0xff]
        %v1231 = vld [vmem:[%s1227 + $0x18] sm:$0xff]
        %v1233 = vsel %vm528, %v1224, 0
        %1235 = vmatprep.subr.mxu0 0.0
        %1236 = vmatpush1.msra.mxu0 0.0
        %1237 = vmatprep.subr.mxu0 0.0
        %1238 = vmatpush1.msra.mxu0 0.0
        %1239 = vmatprep.subr.mxu0 0.0
        %1240 = vmatpush1.msra.mxu0 0.0
        %1241 = vmatprep.subr.mxu0 0.0
        %1242 = vmatpush1.msra.mxu0 0.0
        %1243 = vmatprep.subr.mxu0 0.0
        %1244 = vmatpush1.msra.mxu0 0.0
        %1245 = vmatprep.subr.mxu0 0.0
        %1246 = vmatpush1.msra.mxu0 0.0
        %1247 = vmatprep.subr.mxu0 0.0
        %1248 = vmatpush1.msra.mxu0 0.0
        %1249 = vmatprep.subr.mxu0 0.0
        %1250 = vmatpush1.msra.mxu0 0.0
        %1251 = vmatprep.subr.mxu0 0.0
        %1252 = vmatpush1.msra.mxu0 0.0
        %1253 = vmatprep.subr.mxu0 0.0
        %1254 = vmatpush1.msra.mxu0 0.0
        %1255 = vmatprep.subr.mxu0 0.0
        %1256 = vmatpush1.msra.mxu0 0.0
        %1257 = vmatprep.subr.mxu0 0.0
        %1258 = vmatpush1.msra.mxu0 0.0
        %1259 = vmatprep.subr.mxu0 0.0
        %1260 = vmatpush1.msra.mxu0 %v1231
        %1261 = vmatprep.subr.mxu0 0.0
        %1262 = vmatpush1.msra.mxu0 %v1230
        %1263 = vmatprep.subr.mxu0 0.0
        %1264 = vmatpush1.msra.mxu0 %v1229
        %1265 = vmatprep.subr.mxu0 0.0
        %1266 = vmatpush1.msra.mxu0 %v1228
        %1267 = vmatprep.subr.mxu0 0.0
        %1268 = vmatpush2.msra.mxu0 0.0
        %1269 = vmatprep.subr.mxu0 0.0
        %1270 = vmatpush2.msra.mxu0 0.0
        %1271 = vmatprep.subr.mxu0 0.0
        %1272 = vmatpush2.msra.mxu0 0.0
        %1273 = vmatprep.subr.mxu0 0.0
        %1274 = vmatpush2.msra.mxu0 0.0
        %1275 = vmatprep.subr.mxu0 0.0
        %1276 = vmatpush2.msra.mxu0 0.0
        %1277 = vmatprep.subr.mxu0 0.0
        %1278 = vmatpush2.msra.mxu0 0.0
        %1279 = vmatprep.subr.mxu0 0.0
        %1280 = vmatpush2.msra.mxu0 0.0
        %1281 = vmatprep.subr.mxu0 0.0
        %1282 = vmatpush2.msra.mxu0 0.0
        %1283 = vmatprep.subr.mxu0 0.0
        %1284 = vmatpush2.msra.mxu0 0.0
        %1285 = vmatprep.subr.mxu0 0.0
        %1286 = vmatpush2.msra.mxu0 0.0
        %1287 = vmatprep.subr.mxu0 0.0
        %1288 = vmatpush2.msra.mxu0 0.0
        %1289 = vmatprep.subr.mxu0 0.0
        %1290 = vmatpush2.msra.mxu0 0.0
        %1291 = vmatprep.subr.mxu0 0.0
        %1292 = vmatpush2.msra.mxu0 0.0
        %1293 = vmatprep.subr.mxu0 0.0
        %1294 = vmatpush2.msra.mxu0 0.0
        %1295 = vmatprep.subr.mxu0 0.0
        %1296 = vmatpush2.msra.mxu0 0.0
        %1297 = vmatprep.subr.mxu0 0.0
        %1298 = vmatpush2.msra.mxu0 0.0
        %1299 = vmatprep.mubr.f32.mxu0 0.0
        %1300 = vmatmul.mubr.f32.gmra.mxu0 %v1233
        %v1301 = vpop.f32.mrf.mxu0
        %v1302 = vadd.f32 0.0, %v1301
        %v1303 = vpop.f32.mrf.mxu0
        %1304 = vdwg.mxu0
        %v1306 = vsel %vm528, %v1145, 0
        %1308 = vmatprep.subr.mxu0 0.0
        %1309 = vmatpush1.msra.mxu0 0.0
        %1310 = vmatprep.subr.mxu0 0.0
        %1311 = vmatpush1.msra.mxu0 0.0
        %1312 = vmatprep.subr.mxu0 0.0
        %1313 = vmatpush1.msra.mxu0 0.0
        %1314 = vmatprep.subr.mxu0 0.0
        %1315 = vmatpush1.msra.mxu0 0.0
        %1316 = vmatprep.subr.mxu0 0.0
        %1317 = vmatpush1.msra.mxu0 0.0
        %1318 = vmatprep.subr.mxu0 0.0
        %1319 = vmatpush1.msra.mxu0 0.0
        %1320 = vmatprep.subr.mxu0 0.0
        %1321 = vmatpush1.msra.mxu0 0.0
        %1322 = vmatprep.subr.mxu0 0.0
        %1323 = vmatpush1.msra.mxu0 0.0
        %1324 = vmatprep.subr.mxu0 0.0
        %1325 = vmatpush1.msra.mxu0 0.0
        %1326 = vmatprep.subr.mxu0 0.0
        %1327 = vmatpush1.msra.mxu0 0.0
        %1328 = vmatprep.subr.mxu0 0.0
        %1329 = vmatpush1.msra.mxu0 0.0
        %1330 = vmatprep.subr.mxu0 0.0
        %1331 = vmatpush1.msra.mxu0 0.0
        %1332 = vmatprep.subr.mxu0 0.0
        %1333 = vmatpush1.msra.mxu0 %v1151
        %1334 = vmatprep.subr.mxu0 0.0
        %1335 = vmatpush1.msra.mxu0 %v1150
        %1336 = vmatprep.subr.mxu0 0.0
        %1337 = vmatpush1.msra.mxu0 %v1149
        %1338 = vmatprep.subr.mxu0 0.0
        %1339 = vmatpush1.msra.mxu0 %v1148
        %1340 = vmatprep.subr.mxu0 0.0
        %1341 = vmatpush2.msra.mxu0 0.0
        %1342 = vmatprep.subr.mxu0 0.0
        %1343 = vmatpush2.msra.mxu0 0.0
        %1344 = vmatprep.subr.mxu0 0.0
        %1345 = vmatpush2.msra.mxu0 0.0
        %1346 = vmatprep.subr.mxu0 0.0
        %1347 = vmatpush2.msra.mxu0 0.0
        %1348 = vmatprep.subr.mxu0 0.0
        %1349 = vmatpush2.msra.mxu0 0.0
        %1350 = vmatprep.subr.mxu0 0.0
        %1351 = vmatpush2.msra.mxu0 0.0
        %1352 = vmatprep.subr.mxu0 0.0
        %1353 = vmatpush2.msra.mxu0 0.0
        %1354 = vmatprep.subr.mxu0 0.0
        %1355 = vmatpush2.msra.mxu0 0.0
        %1356 = vmatprep.subr.mxu0 0.0
        %1357 = vmatpush2.msra.mxu0 0.0
        %1358 = vmatprep.subr.mxu0 0.0
        %1359 = vmatpush2.msra.mxu0 0.0
        %1360 = vmatprep.subr.mxu0 0.0
        %1361 = vmatpush2.msra.mxu0 0.0
        %1362 = vmatprep.subr.mxu0 0.0
        %1363 = vmatpush2.msra.mxu0 0.0
        %1364 = vmatprep.subr.mxu0 0.0
        %1365 = vmatpush2.msra.mxu0 0.0
        %1366 = vmatprep.subr.mxu0 0.0
        %1367 = vmatpush2.msra.mxu0 0.0
        %1368 = vmatprep.subr.mxu0 0.0
        %1369 = vmatpush2.msra.mxu0 0.0
        %1370 = vmatprep.subr.mxu0 0.0
        %1371 = vmatpush2.msra.mxu0 0.0
        %1372 = vmatprep.mubr.f32.mxu0 0.0
        %1373 = vmatmul.mubr.f32.gmra.mxu0 %v1306
        %v1374 = vpop.f32.mrf.mxu0
        %v1375 = vadd.f32 %v1302, %v1374
        %v1376 = vpop.f32.mrf.mxu0
        %1377 = vdwg.mxu0
        %s1378 = scalar_lea.vmem %s4, 16
        %v1379 = vld [vmem:[%s1378] sm:$0xff]
        %v1381 = vsel %vm1074, %v1379, 0
        %1383 = vmatprep.subr.mxu0 0.0
        %1384 = vmatpush1.msra.mxu0 0.0
        %1385 = vmatprep.subr.mxu0 0.0
        %1386 = vmatpush1.msra.mxu0 0.0
        %1387 = vmatprep.subr.mxu0 0.0
        %1388 = vmatpush1.msra.mxu0 0.0
        %1389 = vmatprep.subr.mxu0 0.0
        %1390 = vmatpush1.msra.mxu0 0.0
        %1391 = vmatprep.subr.mxu0 0.0
        %1392 = vmatpush1.msra.mxu0 0.0
        %1393 = vmatprep.subr.mxu0 0.0
        %1394 = vmatpush1.msra.mxu0 0.0
        %1395 = vmatprep.subr.mxu0 0.0
        %1396 = vmatpush1.msra.mxu0 0.0
        %1397 = vmatprep.subr.mxu0 0.0
        %1398 = vmatpush1.msra.mxu0 0.0
        %1399 = vmatprep.subr.mxu0 0.0
        %1400 = vmatpush1.msra.mxu0 0.0
        %1401 = vmatprep.subr.mxu0 0.0
        %1402 = vmatpush1.msra.mxu0 0.0
        %1403 = vmatprep.subr.mxu0 0.0
        %1404 = vmatpush1.msra.mxu0 0.0
        %1405 = vmatprep.subr.mxu0 0.0
        %1406 = vmatpush1.msra.mxu0 0.0
        %1407 = vmatprep.subr.mxu0 0.0
        %1408 = vmatpush1.msra.mxu0 0.0
        %1409 = vmatprep.subr.mxu0 0.0
        %1410 = vmatpush1.msra.mxu0 0.0
        %1411 = vmatprep.subr.mxu0 0.0
        %1412 = vmatpush1.msra.mxu0 %v1072
        %1413 = vmatprep.subr.mxu0 0.0
        %1414 = vmatpush1.msra.mxu0 %v1071
        %1415 = vmatprep.subr.mxu0 0.0
        %1416 = vmatpush2.msra.mxu0 0.0
        %1417 = vmatprep.subr.mxu0 0.0
        %1418 = vmatpush2.msra.mxu0 0.0
        %1419 = vmatprep.subr.mxu0 0.0
        %1420 = vmatpush2.msra.mxu0 0.0
        %1421 = vmatprep.subr.mxu0 0.0
        %1422 = vmatpush2.msra.mxu0 0.0
        %1423 = vmatprep.subr.mxu0 0.0
        %1424 = vmatpush2.msra.mxu0 0.0
        %1425 = vmatprep.subr.mxu0 0.0
        %1426 = vmatpush2.msra.mxu0 0.0
        %1427 = vmatprep.subr.mxu0 0.0
        %1428 = vmatpush2.msra.mxu0 0.0
        %1429 = vmatprep.subr.mxu0 0.0
        %1430 = vmatpush2.msra.mxu0 0.0
        %1431 = vmatprep.subr.mxu0 0.0
        %1432 = vmatpush2.msra.mxu0 0.0
        %1433 = vmatprep.subr.mxu0 0.0
        %1434 = vmatpush2.msra.mxu0 0.0
        %1435 = vmatprep.subr.mxu0 0.0
        %1436 = vmatpush2.msra.mxu0 0.0
        %1437 = vmatprep.subr.mxu0 0.0
        %1438 = vmatpush2.msra.mxu0 0.0
        %1439 = vmatprep.subr.mxu0 0.0
        %1440 = vmatpush2.msra.mxu0 0.0
        %1441 = vmatprep.subr.mxu0 0.0
        %1442 = vmatpush2.msra.mxu0 0.0
        %1443 = vmatprep.subr.mxu0 0.0
        %1444 = vmatpush2.msra.mxu0 0.0
        %1445 = vmatprep.subr.mxu0 0.0
        %1446 = vmatpush2.msra.mxu0 0.0
        %1447 = vmatprep.mubr.f32.mxu0 0.0
        %1448 = vmatmul.mubr.f32.gmra.mxu0 %v1381
        %v1449 = vpop.f32.mrf.mxu0
        %v1450 = vadd.f32 0.0, %v1449
        %v1451 = vpop.f32.mrf.mxu0
        %1452 = vdwg.mxu0
        %s1453 = scalar_lea.vmem %s5, 64
        %v1454 = vld [vmem:[%s1453] sm:$0xff]
        %v1455 = vld [vmem:[%s1453 + $0x8] sm:$0xff]
        %v1456 = vld [vmem:[%s1453 + $0x10] sm:$0xff]
        %v1457 = vld [vmem:[%s1453 + $0x18] sm:$0xff]
        %v1459 = vsel %vm528, %v1450, 0
        %1461 = vmatprep.subr.mxu0 0.0
        %1462 = vmatpush1.msra.mxu0 0.0
        %1463 = vmatprep.subr.mxu0 0.0
        %1464 = vmatpush1.msra.mxu0 0.0
        %1465 = vmatprep.subr.mxu0 0.0
        %1466 = vmatpush1.msra.mxu0 0.0
        %1467 = vmatprep.subr.mxu0 0.0
        %1468 = vmatpush1.msra.mxu0 0.0
        %1469 = vmatprep.subr.mxu0 0.0
        %1470 = vmatpush1.msra.mxu0 0.0
        %1471 = vmatprep.subr.mxu0 0.0
        %1472 = vmatpush1.msra.mxu0 0.0
        %1473 = vmatprep.subr.mxu0 0.0
        %1474 = vmatpush1.msra.mxu0 0.0
        %1475 = vmatprep.subr.mxu0 0.0
        %1476 = vmatpush1.msra.mxu0 0.0
        %1477 = vmatprep.subr.mxu0 0.0
        %1478 = vmatpush1.msra.mxu0 0.0
        %1479 = vmatprep.subr.mxu0 0.0
        %1480 = vmatpush1.msra.mxu0 0.0
        %1481 = vmatprep.subr.mxu0 0.0
        %1482 = vmatpush1.msra.mxu0 0.0
        %1483 = vmatprep.subr.mxu0 0.0
        %1484 = vmatpush1.msra.mxu0 0.0
        %1485 = vmatprep.subr.mxu0 0.0
        %1486 = vmatpush1.msra.mxu0 %v1457
        %1487 = vmatprep.subr.mxu0 0.0
        %1488 = vmatpush1.msra.mxu0 %v1456
        %1489 = vmatprep.subr.mxu0 0.0
        %1490 = vmatpush1.msra.mxu0 %v1455
        %1491 = vmatprep.subr.mxu0 0.0
        %1492 = vmatpush1.msra.mxu0 %v1454
        %1493 = vmatprep.subr.mxu0 0.0
        %1494 = vmatpush2.msra.mxu0 0.0
        %1495 = vmatprep.subr.mxu0 0.0
        %1496 = vmatpush2.msra.mxu0 0.0
        %1497 = vmatprep.subr.mxu0 0.0
        %1498 = vmatpush2.msra.mxu0 0.0
        %1499 = vmatprep.subr.mxu0 0.0
        %1500 = vmatpush2.msra.mxu0 0.0
        %1501 = vmatprep.subr.mxu0 0.0
        %1502 = vmatpush2.msra.mxu0 0.0
        %1503 = vmatprep.subr.mxu0 0.0
        %1504 = vmatpush2.msra.mxu0 0.0
        %1505 = vmatprep.subr.mxu0 0.0
        %1506 = vmatpush2.msra.mxu0 0.0
        %1507 = vmatprep.subr.mxu0 0.0
        %1508 = vmatpush2.msra.mxu0 0.0
        %1509 = vmatprep.subr.mxu0 0.0
        %1510 = vmatpush2.msra.mxu0 0.0
        %1511 = vmatprep.subr.mxu0 0.0
        %1512 = vmatpush2.msra.mxu0 0.0
        %1513 = vmatprep.subr.mxu0 0.0
        %1514 = vmatpush2.msra.mxu0 0.0
        %1515 = vmatprep.subr.mxu0 0.0
        %1516 = vmatpush2.msra.mxu0 0.0
        %1517 = vmatprep.subr.mxu0 0.0
        %1518 = vmatpush2.msra.mxu0 0.0
        %1519 = vmatprep.subr.mxu0 0.0
        %1520 = vmatpush2.msra.mxu0 0.0
        %1521 = vmatprep.subr.mxu0 0.0
        %1522 = vmatpush2.msra.mxu0 0.0
        %1523 = vmatprep.subr.mxu0 0.0
        %1524 = vmatpush2.msra.mxu0 0.0
        %1525 = vmatprep.mubr.f32.mxu0 0.0
        %1526 = vmatmul.mubr.f32.gmra.mxu0 %v1459
        %v1527 = vpop.f32.mrf.mxu0
        %v1528 = vadd.f32 0.0, %v1527
        %v1529 = vpop.f32.mrf.mxu0
        %1530 = vdwg.mxu0
        %v1531 = vadd.f32 %v1375, %v1528
        %v1532 = vld [vmem:[%s6] sm:$0x1]
        %v1534 = vlaneseq
        %v1535 = vshrl.u32 %v1534, 7
        %v1536 = vsub.s32 0, %v1535
        %v1537 = vrot.slane %v1532, %v1536
        %v1539 = vadd.f32 %v1531, %v1537
        %v1540 = vmax.f32 %v1539, 0.0
        %v1541 = vld [vmem:[%s7] sm:$0xf]
        %vm1542 = vcmask 64512
        %v1544 = vsel %vm1542, %v1541, 0
        %1546 = vmatprep.subr.mxu0 0.0
        %1547 = vmatpush1.msra.mxu0 0.0
        %1548 = vmatprep.subr.mxu0 0.0
        %1549 = vmatpush1.msra.mxu0 0.0
        %1550 = vmatprep.subr.mxu0 0.0
        %1551 = vmatpush1.msra.mxu0 0.0
        %1552 = vmatprep.subr.mxu0 0.0
        %1553 = vmatpush1.msra.mxu0 0.0
        %1554 = vmatprep.subr.mxu0 0.0
        %1555 = vmatpush1.msra.mxu0 0.0
        %1556 = vmatprep.subr.mxu0 0.0
        %1557 = vmatpush1.msra.mxu0 0.0
        %1558 = vmatprep.subr.mxu0 0.0
        %1559 = vmatpush1.msra.mxu0 0.0
        %1560 = vmatprep.subr.mxu0 0.0
        %1561 = vmatpush1.msra.mxu0 0.0
        %1562 = vmatprep.subr.mxu0 0.0
        %1563 = vmatpush1.msra.mxu0 0.0
        %1564 = vmatprep.subr.mxu0 0.0
        %1565 = vmatpush1.msra.mxu0 0.0
        %1566 = vmatprep.subr.mxu0 0.0
        %1567 = vmatpush1.msra.mxu0 0.0
        %1568 = vmatprep.subr.mxu0 0.0
        %1569 = vmatpush1.msra.mxu0 0.0
        %1570 = vmatprep.subr.mxu0 0.0
        %1571 = vmatpush1.msra.mxu0 0.0
        %1572 = vmatprep.subr.mxu0 0.0
        %1573 = vmatpush1.msra.mxu0 0.0
        %1574 = vmatprep.subr.mxu0 0.0
        %1575 = vmatpush1.msra.mxu0 0.0
        %1576 = vmatprep.subr.mxu0 0.0
        %1577 = vmatpush1.msra.mxu0 %v1540
        %1578 = vmatprep.subr.mxu0 0.0
        %1579 = vmatpush2.msra.mxu0 0.0
        %1580 = vmatprep.subr.mxu0 0.0
        %1581 = vmatpush2.msra.mxu0 0.0
        %1582 = vmatprep.subr.mxu0 0.0
        %1583 = vmatpush2.msra.mxu0 0.0
        %1584 = vmatprep.subr.mxu0 0.0
        %1585 = vmatpush2.msra.mxu0 0.0
        %1586 = vmatprep.subr.mxu0 0.0
        %1587 = vmatpush2.msra.mxu0 0.0
        %1588 = vmatprep.subr.mxu0 0.0
        %1589 = vmatpush2.msra.mxu0 0.0
        %1590 = vmatprep.subr.mxu0 0.0
        %1591 = vmatpush2.msra.mxu0 0.0
        %1592 = vmatprep.subr.mxu0 0.0
        %1593 = vmatpush2.msra.mxu0 0.0
        %1594 = vmatprep.subr.mxu0 0.0
        %1595 = vmatpush2.msra.mxu0 0.0
        %1596 = vmatprep.subr.mxu0 0.0
        %1597 = vmatpush2.msra.mxu0 0.0
        %1598 = vmatprep.subr.mxu0 0.0
        %1599 = vmatpush2.msra.mxu0 0.0
        %1600 = vmatprep.subr.mxu0 0.0
        %1601 = vmatpush2.msra.mxu0 0.0
        %1602 = vmatprep.subr.mxu0 0.0
        %1603 = vmatpush2.msra.mxu0 0.0
        %1604 = vmatprep.subr.mxu0 0.0
        %1605 = vmatpush2.msra.mxu0 0.0
        %1606 = vmatprep.subr.mxu0 0.0
        %1607 = vmatpush2.msra.mxu0 0.0
        %1608 = vmatprep.subr.mxu0 0.0
        %1609 = vmatpush2.msra.mxu0 0.0
        %1610 = vmatprep.mubr.f32.mxu0 0.0
        %1611 = vmatmul.mubr.f32.gmra.mxu0 %v1544
        %v1612 = vpop.f32.mrf.mxu0
        %v1613 = vadd.f32 0.0, %v1612
        %v1614 = vpop.f32.mrf.mxu0
        %1615 = vdwg.mxu0
        %v1616 = vld [vmem:[%s8] sm:$0xff]
        %v1617 = vld [vmem:[%s8 + $0x8] sm:$0xff]
        %v1618 = vld [vmem:[%s8 + $0x10] sm:$0xff]
        %v1619 = vld [vmem:[%s8 + $0x18] sm:$0xff]
        %s1620 = scalar_lea.vmem %s7, 4
        %v1621 = vld [vmem:[%s1620] sm:$0xf]
        %v1623 = vsel %vm1542, %v1621, 0
        %1625 = vmatprep.subr.mxu0 0.0
        %1626 = vmatpush1.msra.mxu0 0.0
        %1627 = vmatprep.subr.mxu0 0.0
        %1628 = vmatpush1.msra.mxu0 0.0
        %1629 = vmatprep.subr.mxu0 0.0
        %1630 = vmatpush1.msra.mxu0 0.0
        %1631 = vmatprep.subr.mxu0 0.0
        %1632 = vmatpush1.msra.mxu0 0.0
        %1633 = vmatprep.subr.mxu0 0.0
        %1634 = vmatpush1.msra.mxu0 0.0
        %1635 = vmatprep.subr.mxu0 0.0
        %1636 = vmatpush1.msra.mxu0 0.0
        %1637 = vmatprep.subr.mxu0 0.0
        %1638 = vmatpush1.msra.mxu0 0.0
        %1639 = vmatprep.subr.mxu0 0.0
        %1640 = vmatpush1.msra.mxu0 0.0
        %1641 = vmatprep.subr.mxu0 0.0
        %1642 = vmatpush1.msra.mxu0 0.0
        %1643 = vmatprep.subr.mxu0 0.0
        %1644 = vmatpush1.msra.mxu0 0.0
        %1645 = vmatprep.subr.mxu0 0.0
        %1646 = vmatpush1.msra.mxu0 0.0
        %1647 = vmatprep.subr.mxu0 0.0
        %1648 = vmatpush1.msra.mxu0 0.0
        %1649 = vmatprep.subr.mxu0 0.0
        %1650 = vmatpush1.msra.mxu0 0.0
        %1651 = vmatprep.subr.mxu0 0.0
        %1652 = vmatpush1.msra.mxu0 0.0
        %1653 = vmatprep.subr.mxu0 0.0
        %1654 = vmatpush1.msra.mxu0 0.0
        %1655 = vmatprep.subr.mxu0 0.0
        %1656 = vmatpush1.msra.mxu0 %v1540
        %1657 = vmatprep.subr.mxu0 0.0
        %1658 = vmatpush2.msra.mxu0 0.0
        %1659 = vmatprep.subr.mxu0 0.0
        %1660 = vmatpush2.msra.mxu0 0.0
        %1661 = vmatprep.subr.mxu0 0.0
        %1662 = vmatpush2.msra.mxu0 0.0
        %1663 = vmatprep.subr.mxu0 0.0
        %1664 = vmatpush2.msra.mxu0 0.0
        %1665 = vmatprep.subr.mxu0 0.0
        %1666 = vmatpush2.msra.mxu0 0.0
        %1667 = vmatprep.subr.mxu0 0.0
        %1668 = vmatpush2.msra.mxu0 0.0
        %1669 = vmatprep.subr.mxu0 0.0
        %1670 = vmatpush2.msra.mxu0 0.0
        %1671 = vmatprep.subr.mxu0 0.0
        %1672 = vmatpush2.msra.mxu0 0.0
        %1673 = vmatprep.subr.mxu0 0.0
        %1674 = vmatpush2.msra.mxu0 0.0
        %1675 = vmatprep.subr.mxu0 0.0
        %1676 = vmatpush2.msra.mxu0 0.0
        %1677 = vmatprep.subr.mxu0 0.0
        %1678 = vmatpush2.msra.mxu0 0.0
        %1679 = vmatprep.subr.mxu0 0.0
        %1680 = vmatpush2.msra.mxu0 0.0
        %1681 = vmatprep.subr.mxu0 0.0
        %1682 = vmatpush2.msra.mxu0 0.0
        %1683 = vmatprep.subr.mxu0 0.0
        %1684 = vmatpush2.msra.mxu0 0.0
        %1685 = vmatprep.subr.mxu0 0.0
        %1686 = vmatpush2.msra.mxu0 0.0
        %1687 = vmatprep.subr.mxu0 0.0
        %1688 = vmatpush2.msra.mxu0 0.0
        %1689 = vmatprep.mubr.f32.mxu0 0.0
        %1690 = vmatmul.mubr.f32.gmra.mxu0 %v1623
        %v1691 = vpop.f32.mrf.mxu0
        %v1692 = vadd.f32 0.0, %v1691
        %v1693 = vpop.f32.mrf.mxu0
        %1694 = vdwg.mxu0
        %s1695 = scalar_lea.vmem %s8, 32
        %v1696 = vld [vmem:[%s1695] sm:$0xff]
        %v1697 = vld [vmem:[%s1695 + $0x8] sm:$0xff]
        %v1698 = vld [vmem:[%s1695 + $0x10] sm:$0xff]
        %v1699 = vld [vmem:[%s1695 + $0x18] sm:$0xff]
        %v1701 = vsel %vm528, %v1692, 0
        %1703 = vmatprep.subr.mxu0 0.0
        %1704 = vmatpush1.msra.mxu0 0.0
        %1705 = vmatprep.subr.mxu0 0.0
        %1706 = vmatpush1.msra.mxu0 0.0
        %1707 = vmatprep.subr.mxu0 0.0
        %1708 = vmatpush1.msra.mxu0 0.0
        %1709 = vmatprep.subr.mxu0 0.0
        %1710 = vmatpush1.msra.mxu0 0.0
        %1711 = vmatprep.subr.mxu0 0.0
        %1712 = vmatpush1.msra.mxu0 0.0
        %1713 = vmatprep.subr.mxu0 0.0
        %1714 = vmatpush1.msra.mxu0 0.0
        %1715 = vmatprep.subr.mxu0 0.0
        %1716 = vmatpush1.msra.mxu0 0.0
        %1717 = vmatprep.subr.mxu0 0.0
        %1718 = vmatpush1.msra.mxu0 0.0
        %1719 = vmatprep.subr.mxu0 0.0
        %1720 = vmatpush1.msra.mxu0 0.0
        %1721 = vmatprep.subr.mxu0 0.0
        %1722 = vmatpush1.msra.mxu0 0.0
        %1723 = vmatprep.subr.mxu0 0.0
        %1724 = vmatpush1.msra.mxu0 0.0
        %1725 = vmatprep.subr.mxu0 0.0
        %1726 = vmatpush1.msra.mxu0 0.0
        %1727 = vmatprep.subr.mxu0 0.0
        %1728 = vmatpush1.msra.mxu0 %v1699
        %1729 = vmatprep.subr.mxu0 0.0
        %1730 = vmatpush1.msra.mxu0 %v1698
        %1731 = vmatprep.subr.mxu0 0.0
        %1732 = vmatpush1.msra.mxu0 %v1697
        %1733 = vmatprep.subr.mxu0 0.0
        %1734 = vmatpush1.msra.mxu0 %v1696
        %1735 = vmatprep.subr.mxu0 0.0
        %1736 = vmatpush2.msra.mxu0 0.0
        %1737 = vmatprep.subr.mxu0 0.0
        %1738 = vmatpush2.msra.mxu0 0.0
        %1739 = vmatprep.subr.mxu0 0.0
        %1740 = vmatpush2.msra.mxu0 0.0
        %1741 = vmatprep.subr.mxu0 0.0
        %1742 = vmatpush2.msra.mxu0 0.0
        %1743 = vmatprep.subr.mxu0 0.0
        %1744 = vmatpush2.msra.mxu0 0.0
        %1745 = vmatprep.subr.mxu0 0.0
        %1746 = vmatpush2.msra.mxu0 0.0
        %1747 = vmatprep.subr.mxu0 0.0
        %1748 = vmatpush2.msra.mxu0 0.0
        %1749 = vmatprep.subr.mxu0 0.0
        %1750 = vmatpush2.msra.mxu0 0.0
        %1751 = vmatprep.subr.mxu0 0.0
        %1752 = vmatpush2.msra.mxu0 0.0
        %1753 = vmatprep.subr.mxu0 0.0
        %1754 = vmatpush2.msra.mxu0 0.0
        %1755 = vmatprep.subr.mxu0 0.0
        %1756 = vmatpush2.msra.mxu0 0.0
        %1757 = vmatprep.subr.mxu0 0.0
        %1758 = vmatpush2.msra.mxu0 0.0
        %1759 = vmatprep.subr.mxu0 0.0
        %1760 = vmatpush2.msra.mxu0 0.0
        %1761 = vmatprep.subr.mxu0 0.0
        %1762 = vmatpush2.msra.mxu0 0.0
        %1763 = vmatprep.subr.mxu0 0.0
        %1764 = vmatpush2.msra.mxu0 0.0
        %1765 = vmatprep.subr.mxu0 0.0
        %1766 = vmatpush2.msra.mxu0 0.0
        %1767 = vmatprep.mubr.f32.mxu0 0.0
        %1768 = vmatmul.mubr.f32.gmra.mxu0 %v1701
        %v1769 = vpop.f32.mrf.mxu0
        %v1770 = vadd.f32 0.0, %v1769
        %v1771 = vpop.f32.mrf.mxu0
        %1772 = vdwg.mxu0
        %v1774 = vsel %vm528, %v1613, 0
        %1776 = vmatprep.subr.mxu0 0.0
        %1777 = vmatpush1.msra.mxu0 0.0
        %1778 = vmatprep.subr.mxu0 0.0
        %1779 = vmatpush1.msra.mxu0 0.0
        %1780 = vmatprep.subr.mxu0 0.0
        %1781 = vmatpush1.msra.mxu0 0.0
        %1782 = vmatprep.subr.mxu0 0.0
        %1783 = vmatpush1.msra.mxu0 0.0
        %1784 = vmatprep.subr.mxu0 0.0
        %1785 = vmatpush1.msra.mxu0 0.0
        %1786 = vmatprep.subr.mxu0 0.0
        %1787 = vmatpush1.msra.mxu0 0.0
        %1788 = vmatprep.subr.mxu0 0.0
        %1789 = vmatpush1.msra.mxu0 0.0
        %1790 = vmatprep.subr.mxu0 0.0
        %1791 = vmatpush1.msra.mxu0 0.0
        %1792 = vmatprep.subr.mxu0 0.0
        %1793 = vmatpush1.msra.mxu0 0.0
        %1794 = vmatprep.subr.mxu0 0.0
        %1795 = vmatpush1.msra.mxu0 0.0
        %1796 = vmatprep.subr.mxu0 0.0
        %1797 = vmatpush1.msra.mxu0 0.0
        %1798 = vmatprep.subr.mxu0 0.0
        %1799 = vmatpush1.msra.mxu0 0.0
        %1800 = vmatprep.subr.mxu0 0.0
        %1801 = vmatpush1.msra.mxu0 %v1619
        %1802 = vmatprep.subr.mxu0 0.0
        %1803 = vmatpush1.msra.mxu0 %v1618
        %1804 = vmatprep.subr.mxu0 0.0
        %1805 = vmatpush1.msra.mxu0 %v1617
        %1806 = vmatprep.subr.mxu0 0.0
        %1807 = vmatpush1.msra.mxu0 %v1616
        %1808 = vmatprep.subr.mxu0 0.0
        %1809 = vmatpush2.msra.mxu0 0.0
        %1810 = vmatprep.subr.mxu0 0.0
        %1811 = vmatpush2.msra.mxu0 0.0
        %1812 = vmatprep.subr.mxu0 0.0
        %1813 = vmatpush2.msra.mxu0 0.0
        %1814 = vmatprep.subr.mxu0 0.0
        %1815 = vmatpush2.msra.mxu0 0.0
        %1816 = vmatprep.subr.mxu0 0.0
        %1817 = vmatpush2.msra.mxu0 0.0
        %1818 = vmatprep.subr.mxu0 0.0
        %1819 = vmatpush2.msra.mxu0 0.0
        %1820 = vmatprep.subr.mxu0 0.0
        %1821 = vmatpush2.msra.mxu0 0.0
        %1822 = vmatprep.subr.mxu0 0.0
        %1823 = vmatpush2.msra.mxu0 0.0
        %1824 = vmatprep.subr.mxu0 0.0
        %1825 = vmatpush2.msra.mxu0 0.0
        %1826 = vmatprep.subr.mxu0 0.0
        %1827 = vmatpush2.msra.mxu0 0.0
        %1828 = vmatprep.subr.mxu0 0.0
        %1829 = vmatpush2.msra.mxu0 0.0
        %1830 = vmatprep.subr.mxu0 0.0
        %1831 = vmatpush2.msra.mxu0 0.0
        %1832 = vmatprep.subr.mxu0 0.0
        %1833 = vmatpush2.msra.mxu0 0.0
        %1834 = vmatprep.subr.mxu0 0.0
        %1835 = vmatpush2.msra.mxu0 0.0
        %1836 = vmatprep.subr.mxu0 0.0
        %1837 = vmatpush2.msra.mxu0 0.0
        %1838 = vmatprep.subr.mxu0 0.0
        %1839 = vmatpush2.msra.mxu0 0.0
        %1840 = vmatprep.mubr.f32.mxu0 0.0
        %1841 = vmatmul.mubr.f32.gmra.mxu0 %v1774
        %v1842 = vpop.f32.mrf.mxu0
        %v1843 = vadd.f32 %v1770, %v1842
        %v1844 = vpop.f32.mrf.mxu0
        %1845 = vdwg.mxu0
        %s1846 = scalar_lea.vmem %s7, 8
        %v1847 = vld [vmem:[%s1846] sm:$0xf]
        %v1849 = vsel %vm1542, %v1847, 0
        %1851 = vmatprep.subr.mxu0 0.0
        %1852 = vmatpush1.msra.mxu0 0.0
        %1853 = vmatprep.subr.mxu0 0.0
        %1854 = vmatpush1.msra.mxu0 0.0
        %1855 = vmatprep.subr.mxu0 0.0
        %1856 = vmatpush1.msra.mxu0 0.0
        %1857 = vmatprep.subr.mxu0 0.0
        %1858 = vmatpush1.msra.mxu0 0.0
        %1859 = vmatprep.subr.mxu0 0.0
        %1860 = vmatpush1.msra.mxu0 0.0
        %1861 = vmatprep.subr.mxu0 0.0
        %1862 = vmatpush1.msra.mxu0 0.0
        %1863 = vmatprep.subr.mxu0 0.0
        %1864 = vmatpush1.msra.mxu0 0.0
        %1865 = vmatprep.subr.mxu0 0.0
        %1866 = vmatpush1.msra.mxu0 0.0
        %1867 = vmatprep.subr.mxu0 0.0
        %1868 = vmatpush1.msra.mxu0 0.0
        %1869 = vmatprep.subr.mxu0 0.0
        %1870 = vmatpush1.msra.mxu0 0.0
        %1871 = vmatprep.subr.mxu0 0.0
        %1872 = vmatpush1.msra.mxu0 0.0
        %1873 = vmatprep.subr.mxu0 0.0
        %1874 = vmatpush1.msra.mxu0 0.0
        %1875 = vmatprep.subr.mxu0 0.0
        %1876 = vmatpush1.msra.mxu0 0.0
        %1877 = vmatprep.subr.mxu0 0.0
        %1878 = vmatpush1.msra.mxu0 0.0
        %1879 = vmatprep.subr.mxu0 0.0
        %1880 = vmatpush1.msra.mxu0 0.0
        %1881 = vmatprep.subr.mxu0 0.0
        %1882 = vmatpush1.msra.mxu0 %v1540
        %1883 = vmatprep.subr.mxu0 0.0
        %1884 = vmatpush2.msra.mxu0 0.0
        %1885 = vmatprep.subr.mxu0 0.0
        %1886 = vmatpush2.msra.mxu0 0.0
        %1887 = vmatprep.subr.mxu0 0.0
        %1888 = vmatpush2.msra.mxu0 0.0
        %1889 = vmatprep.subr.mxu0 0.0
        %1890 = vmatpush2.msra.mxu0 0.0
        %1891 = vmatprep.subr.mxu0 0.0
        %1892 = vmatpush2.msra.mxu0 0.0
        %1893 = vmatprep.subr.mxu0 0.0
        %1894 = vmatpush2.msra.mxu0 0.0
        %1895 = vmatprep.subr.mxu0 0.0
        %1896 = vmatpush2.msra.mxu0 0.0
        %1897 = vmatprep.subr.mxu0 0.0
        %1898 = vmatpush2.msra.mxu0 0.0
        %1899 = vmatprep.subr.mxu0 0.0
        %1900 = vmatpush2.msra.mxu0 0.0
        %1901 = vmatprep.subr.mxu0 0.0
        %1902 = vmatpush2.msra.mxu0 0.0
        %1903 = vmatprep.subr.mxu0 0.0
        %1904 = vmatpush2.msra.mxu0 0.0
        %1905 = vmatprep.subr.mxu0 0.0
        %1906 = vmatpush2.msra.mxu0 0.0
        %1907 = vmatprep.subr.mxu0 0.0
        %1908 = vmatpush2.msra.mxu0 0.0
        %1909 = vmatprep.subr.mxu0 0.0
        %1910 = vmatpush2.msra.mxu0 0.0
        %1911 = vmatprep.subr.mxu0 0.0
        %1912 = vmatpush2.msra.mxu0 0.0
        %1913 = vmatprep.subr.mxu0 0.0
        %1914 = vmatpush2.msra.mxu0 0.0
        %1915 = vmatprep.mubr.f32.mxu0 0.0
        %1916 = vmatmul.mubr.f32.gmra.mxu0 %v1849
        %v1917 = vpop.f32.mrf.mxu0
        %v1918 = vadd.f32 0.0, %v1917
        %v1919 = vpop.f32.mrf.mxu0
        %1920 = vdwg.mxu0
        %s1921 = scalar_lea.vmem %s8, 64
        %v1922 = vld [vmem:[%s1921] sm:$0xff]
        %v1923 = vld [vmem:[%s1921 + $0x8] sm:$0xff]
        %v1924 = vld [vmem:[%s1921 + $0x10] sm:$0xff]
        %v1925 = vld [vmem:[%s1921 + $0x18] sm:$0xff]
        %v1927 = vsel %vm528, %v1918, 0
        %1929 = vmatprep.subr.mxu0 0.0
        %1930 = vmatpush1.msra.mxu0 0.0
        %1931 = vmatprep.subr.mxu0 0.0
        %1932 = vmatpush1.msra.mxu0 0.0
        %1933 = vmatprep.subr.mxu0 0.0
        %1934 = vmatpush1.msra.mxu0 0.0
        %1935 = vmatprep.subr.mxu0 0.0
        %1936 = vmatpush1.msra.mxu0 0.0
        %1937 = vmatprep.subr.mxu0 0.0
        %1938 = vmatpush1.msra.mxu0 0.0
        %1939 = vmatprep.subr.mxu0 0.0
        %1940 = vmatpush1.msra.mxu0 0.0
        %1941 = vmatprep.subr.mxu0 0.0
        %1942 = vmatpush1.msra.mxu0 0.0
        %1943 = vmatprep.subr.mxu0 0.0
        %1944 = vmatpush1.msra.mxu0 0.0
        %1945 = vmatprep.subr.mxu0 0.0
        %1946 = vmatpush1.msra.mxu0 0.0
        %1947 = vmatprep.subr.mxu0 0.0
        %1948 = vmatpush1.msra.mxu0 0.0
        %1949 = vmatprep.subr.mxu0 0.0
        %1950 = vmatpush1.msra.mxu0 0.0
        %1951 = vmatprep.subr.mxu0 0.0
        %1952 = vmatpush1.msra.mxu0 0.0
        %1953 = vmatprep.subr.mxu0 0.0
        %1954 = vmatpush1.msra.mxu0 %v1925
        %1955 = vmatprep.subr.mxu0 0.0
        %1956 = vmatpush1.msra.mxu0 %v1924
        %1957 = vmatprep.subr.mxu0 0.0
        %1958 = vmatpush1.msra.mxu0 %v1923
        %1959 = vmatprep.subr.mxu0 0.0
        %1960 = vmatpush1.msra.mxu0 %v1922
        %1961 = vmatprep.subr.mxu0 0.0
        %1962 = vmatpush2.msra.mxu0 0.0
        %1963 = vmatprep.subr.mxu0 0.0
        %1964 = vmatpush2.msra.mxu0 0.0
        %1965 = vmatprep.subr.mxu0 0.0
        %1966 = vmatpush2.msra.mxu0 0.0
        %1967 = vmatprep.subr.mxu0 0.0
        %1968 = vmatpush2.msra.mxu0 0.0
        %1969 = vmatprep.subr.mxu0 0.0
        %1970 = vmatpush2.msra.mxu0 0.0
        %1971 = vmatprep.subr.mxu0 0.0
        %1972 = vmatpush2.msra.mxu0 0.0
        %1973 = vmatprep.subr.mxu0 0.0
        %1974 = vmatpush2.msra.mxu0 0.0
        %1975 = vmatprep.subr.mxu0 0.0
        %1976 = vmatpush2.msra.mxu0 0.0
        %1977 = vmatprep.subr.mxu0 0.0
        %1978 = vmatpush2.msra.mxu0 0.0
        %1979 = vmatprep.subr.mxu0 0.0
        %1980 = vmatpush2.msra.mxu0 0.0
        %1981 = vmatprep.subr.mxu0 0.0
        %1982 = vmatpush2.msra.mxu0 0.0
        %1983 = vmatprep.subr.mxu0 0.0
        %1984 = vmatpush2.msra.mxu0 0.0
        %1985 = vmatprep.subr.mxu0 0.0
        %1986 = vmatpush2.msra.mxu0 0.0
        %1987 = vmatprep.subr.mxu0 0.0
        %1988 = vmatpush2.msra.mxu0 0.0
        %1989 = vmatprep.subr.mxu0 0.0
        %1990 = vmatpush2.msra.mxu0 0.0
        %1991 = vmatprep.subr.mxu0 0.0
        %1992 = vmatpush2.msra.mxu0 0.0
        %1993 = vmatprep.mubr.f32.mxu0 0.0
        %1994 = vmatmul.mubr.f32.gmra.mxu0 %v1927
        %v1995 = vpop.f32.mrf.mxu0
        %v1996 = vadd.f32 0.0, %v1995
        %v1997 = vpop.f32.mrf.mxu0
        %1998 = vdwg.mxu0
        %v1999 = vadd.f32 %v1843, %v1996
        %v2000 = vld [vmem:[%s9] sm:$0x1]
        %v2002 = vlaneseq
        %v2003 = vshrl.u32 %v2002, 7
        %v2004 = vsub.s32 0, %v2003
        %v2005 = vrot.slane %v2000, %v2004
        %v2007 = vadd.f32 %v1999, %v2005
        %v2008 = vmax.f32 %v2007, 0.0
        %v2009 = vld [vmem:[%s10] sm:$0xff]
        %v2010 = vld [vmem:[%s10 + $0x8] sm:$0xff]
        %v2011 = vld [vmem:[%s10 + $0x10] sm:$0xff]
        %v2012 = vld [vmem:[%s10 + $0x18] sm:$0xff]
        %s2013 = scalar_lea.vmem %s10, 32
        %v2014 = vld [vmem:[%s2013] sm:$0xff]
        %v2015 = vld [vmem:[%s2013 + $0x8] sm:$0xff]
        %v2016 = vld [vmem:[%s2013 + $0x10] sm:$0xff]
        %v2017 = vld [vmem:[%s2013 + $0x18] sm:$0xff]
        %v2019 = vrot.slane %v2008, 1
        %v2020 = vsel %vm528, %v2019, 0
        %2022 = vmatprep.subr.mxu0 0.0
        %2023 = vmatpush1.msra.mxu0 0.0
        %2024 = vmatprep.subr.mxu0 0.0
        %2025 = vmatpush1.msra.mxu0 0.0
        %2026 = vmatprep.subr.mxu0 0.0
        %2027 = vmatpush1.msra.mxu0 0.0
        %2028 = vmatprep.subr.mxu0 0.0
        %2029 = vmatpush1.msra.mxu0 0.0
        %2030 = vmatprep.subr.mxu0 0.0
        %2031 = vmatpush1.msra.mxu0 0.0
        %2032 = vmatprep.subr.mxu0 0.0
        %2033 = vmatpush1.msra.mxu0 0.0
        %2034 = vmatprep.subr.mxu0 0.0
        %2035 = vmatpush1.msra.mxu0 0.0
        %2036 = vmatprep.subr.mxu0 0.0
        %2037 = vmatpush1.msra.mxu0 0.0
        %2038 = vmatprep.subr.mxu0 0.0
        %2039 = vmatpush1.msra.mxu0 0.0
        %2040 = vmatprep.subr.mxu0 0.0
        %2041 = vmatpush1.msra.mxu0 0.0
        %2042 = vmatprep.subr.mxu0 0.0
        %2043 = vmatpush1.msra.mxu0 0.0
        %2044 = vmatprep.subr.mxu0 0.0
        %2045 = vmatpush1.msra.mxu0 0.0
        %2046 = vmatprep.subr.mxu0 0.0
        %2047 = vmatpush1.msra.mxu0 %v2017
        %2048 = vmatprep.subr.mxu0 0.0
        %2049 = vmatpush1.msra.mxu0 %v2016
        %2050 = vmatprep.subr.mxu0 0.0
        %2051 = vmatpush1.msra.mxu0 %v2015
        %2052 = vmatprep.subr.mxu0 0.0
        %2053 = vmatpush1.msra.mxu0 %v2014
        %2054 = vmatprep.subr.mxu0 0.0
        %2055 = vmatpush2.msra.mxu0 0.0
        %2056 = vmatprep.subr.mxu0 0.0
        %2057 = vmatpush2.msra.mxu0 0.0
        %2058 = vmatprep.subr.mxu0 0.0
        %2059 = vmatpush2.msra.mxu0 0.0
        %2060 = vmatprep.subr.mxu0 0.0
        %2061 = vmatpush2.msra.mxu0 0.0
        %2062 = vmatprep.subr.mxu0 0.0
        %2063 = vmatpush2.msra.mxu0 0.0
        %2064 = vmatprep.subr.mxu0 0.0
        %2065 = vmatpush2.msra.mxu0 0.0
        %2066 = vmatprep.subr.mxu0 0.0
        %2067 = vmatpush2.msra.mxu0 0.0
        %2068 = vmatprep.subr.mxu0 0.0
        %2069 = vmatpush2.msra.mxu0 0.0
        %2070 = vmatprep.subr.mxu0 0.0
        %2071 = vmatpush2.msra.mxu0 0.0
        %2072 = vmatprep.subr.mxu0 0.0
        %2073 = vmatpush2.msra.mxu0 0.0
        %2074 = vmatprep.subr.mxu0 0.0
        %2075 = vmatpush2.msra.mxu0 0.0
        %2076 = vmatprep.subr.mxu0 0.0
        %2077 = vmatpush2.msra.mxu0 0.0
        %2078 = vmatprep.subr.mxu0 0.0
        %2079 = vmatpush2.msra.mxu0 0.0
        %2080 = vmatprep.subr.mxu0 0.0
        %2081 = vmatpush2.msra.mxu0 0.0
        %2082 = vmatprep.subr.mxu0 0.0
        %2083 = vmatpush2.msra.mxu0 0.0
        %2084 = vmatprep.subr.mxu0 0.0
        %2085 = vmatpush2.msra.mxu0 0.0
        %2086 = vmatprep.mubr.f32.mxu0 0.0
        %2087 = vmatmul.mubr.f32.gmra.mxu0 %v2020
        %v2088 = vpop.f32.mrf.mxu0
        %v2089 = vadd.f32 0.0, %v2088
        %v2090 = vpop.f32.mrf.mxu0
        %2091 = vdwg.mxu0
        %v2092 = vsel %vm528, %v2008, 0
        %2094 = vmatprep.subr.mxu0 0.0
        %2095 = vmatpush1.msra.mxu0 0.0
        %2096 = vmatprep.subr.mxu0 0.0
        %2097 = vmatpush1.msra.mxu0 0.0
        %2098 = vmatprep.subr.mxu0 0.0
        %2099 = vmatpush1.msra.mxu0 0.0
        %2100 = vmatprep.subr.mxu0 0.0
        %2101 = vmatpush1.msra.mxu0 0.0
        %2102 = vmatprep.subr.mxu0 0.0
        %2103 = vmatpush1.msra.mxu0 0.0
        %2104 = vmatprep.subr.mxu0 0.0
        %2105 = vmatpush1.msra.mxu0 0.0
        %2106 = vmatprep.subr.mxu0 0.0
        %2107 = vmatpush1.msra.mxu0 0.0
        %2108 = vmatprep.subr.mxu0 0.0
        %2109 = vmatpush1.msra.mxu0 0.0
        %2110 = vmatprep.subr.mxu0 0.0
        %2111 = vmatpush1.msra.mxu0 0.0
        %2112 = vmatprep.subr.mxu0 0.0
        %2113 = vmatpush1.msra.mxu0 0.0
        %2114 = vmatprep.subr.mxu0 0.0
        %2115 = vmatpush1.msra.mxu0 0.0
        %2116 = vmatprep.subr.mxu0 0.0
        %2117 = vmatpush1.msra.mxu0 0.0
        %2118 = vmatprep.subr.mxu0 0.0
        %2119 = vmatpush1.msra.mxu0 %v2012
        %2120 = vmatprep.subr.mxu0 0.0
        %2121 = vmatpush1.msra.mxu0 %v2011
        %2122 = vmatprep.subr.mxu0 0.0
        %2123 = vmatpush1.msra.mxu0 %v2010
        %2124 = vmatprep.subr.mxu0 0.0
        %2125 = vmatpush1.msra.mxu0 %v2009
        %2126 = vmatprep.subr.mxu0 0.0
        %2127 = vmatpush2.msra.mxu0 0.0
        %2128 = vmatprep.subr.mxu0 0.0
        %2129 = vmatpush2.msra.mxu0 0.0
        %2130 = vmatprep.subr.mxu0 0.0
        %2131 = vmatpush2.msra.mxu0 0.0
        %2132 = vmatprep.subr.mxu0 0.0
        %2133 = vmatpush2.msra.mxu0 0.0
        %2134 = vmatprep.subr.mxu0 0.0
        %2135 = vmatpush2.msra.mxu0 0.0
        %2136 = vmatprep.subr.mxu0 0.0
        %2137 = vmatpush2.msra.mxu0 0.0
        %2138 = vmatprep.subr.mxu0 0.0
        %2139 = vmatpush2.msra.mxu0 0.0
        %2140 = vmatprep.subr.mxu0 0.0
        %2141 = vmatpush2.msra.mxu0 0.0
        %2142 = vmatprep.subr.mxu0 0.0
        %2143 = vmatpush2.msra.mxu0 0.0
        %2144 = vmatprep.subr.mxu0 0.0
        %2145 = vmatpush2.msra.mxu0 0.0
        %2146 = vmatprep.subr.mxu0 0.0
        %2147 = vmatpush2.msra.mxu0 0.0
        %2148 = vmatprep.subr.mxu0 0.0
        %2149 = vmatpush2.msra.mxu0 0.0
        %2150 = vmatprep.subr.mxu0 0.0
        %2151 = vmatpush2.msra.mxu0 0.0
        %2152 = vmatprep.subr.mxu0 0.0
        %2153 = vmatpush2.msra.mxu0 0.0
        %2154 = vmatprep.subr.mxu0 0.0
        %2155 = vmatpush2.msra.mxu0 0.0
        %2156 = vmatprep.subr.mxu0 0.0
        %2157 = vmatpush2.msra.mxu0 0.0
        %2158 = vmatprep.mubr.f32.mxu0 0.0
        %2159 = vmatmul.mubr.f32.gmra.mxu0 %v2092
        %v2160 = vpop.f32.mrf.mxu0
        %v2161 = vadd.f32 %v2089, %v2160
        %v2162 = vpop.f32.mrf.mxu0
        %2163 = vdwg.mxu0
        %s2164 = scalar_lea.vmem %s10, 64
        %v2165 = vld [vmem:[%s2164] sm:$0xff]
        %v2166 = vld [vmem:[%s2164 + $0x8] sm:$0xff]
        %v2167 = vld [vmem:[%s2164 + $0x10] sm:$0xff]
        %v2168 = vld [vmem:[%s2164 + $0x18] sm:$0xff]
        %v2169 = vrot.slane %v2008, 2
        %v2170 = vsel %vm528, %v2169, 0
        %2172 = vmatprep.subr.mxu0 0.0
        %2173 = vmatpush1.msra.mxu0 0.0
        %2174 = vmatprep.subr.mxu0 0.0
        %2175 = vmatpush1.msra.mxu0 0.0
        %2176 = vmatprep.subr.mxu0 0.0
        %2177 = vmatpush1.msra.mxu0 0.0
        %2178 = vmatprep.subr.mxu0 0.0
        %2179 = vmatpush1.msra.mxu0 0.0
        %2180 = vmatprep.subr.mxu0 0.0
        %2181 = vmatpush1.msra.mxu0 0.0
        %2182 = vmatprep.subr.mxu0 0.0
        %2183 = vmatpush1.msra.mxu0 0.0
        %2184 = vmatprep.subr.mxu0 0.0
        %2185 = vmatpush1.msra.mxu0 0.0
        %2186 = vmatprep.subr.mxu0 0.0
        %2187 = vmatpush1.msra.mxu0 0.0
        %2188 = vmatprep.subr.mxu0 0.0
        %2189 = vmatpush1.msra.mxu0 0.0
        %2190 = vmatprep.subr.mxu0 0.0
        %2191 = vmatpush1.msra.mxu0 0.0
        %2192 = vmatprep.subr.mxu0 0.0
        %2193 = vmatpush1.msra.mxu0 0.0
        %2194 = vmatprep.subr.mxu0 0.0
        %2195 = vmatpush1.msra.mxu0 0.0
        %2196 = vmatprep.subr.mxu0 0.0
        %2197 = vmatpush1.msra.mxu0 %v2168
        %2198 = vmatprep.subr.mxu0 0.0
        %2199 = vmatpush1.msra.mxu0 %v2167
        %2200 = vmatprep.subr.mxu0 0.0
        %2201 = vmatpush1.msra.mxu0 %v2166
        %2202 = vmatprep.subr.mxu0 0.0
        %2203 = vmatpush1.msra.mxu0 %v2165
        %2204 = vmatprep.subr.mxu0 0.0
        %2205 = vmatpush2.msra.mxu0 0.0
        %2206 = vmatprep.subr.mxu0 0.0
        %2207 = vmatpush2.msra.mxu0 0.0
        %2208 = vmatprep.subr.mxu0 0.0
        %2209 = vmatpush2.msra.mxu0 0.0
        %2210 = vmatprep.subr.mxu0 0.0
        %2211 = vmatpush2.msra.mxu0 0.0
        %2212 = vmatprep.subr.mxu0 0.0
        %2213 = vmatpush2.msra.mxu0 0.0
        %2214 = vmatprep.subr.mxu0 0.0
        %2215 = vmatpush2.msra.mxu0 0.0
        %2216 = vmatprep.subr.mxu0 0.0
        %2217 = vmatpush2.msra.mxu0 0.0
        %2218 = vmatprep.subr.mxu0 0.0
        %2219 = vmatpush2.msra.mxu0 0.0
        %2220 = vmatprep.subr.mxu0 0.0
        %2221 = vmatpush2.msra.mxu0 0.0
        %2222 = vmatprep.subr.mxu0 0.0
        %2223 = vmatpush2.msra.mxu0 0.0
        %2224 = vmatprep.subr.mxu0 0.0
        %2225 = vmatpush2.msra.mxu0 0.0
        %2226 = vmatprep.subr.mxu0 0.0
        %2227 = vmatpush2.msra.mxu0 0.0
        %2228 = vmatprep.subr.mxu0 0.0
        %2229 = vmatpush2.msra.mxu0 0.0
        %2230 = vmatprep.subr.mxu0 0.0
        %2231 = vmatpush2.msra.mxu0 0.0
        %2232 = vmatprep.subr.mxu0 0.0
        %2233 = vmatpush2.msra.mxu0 0.0
        %2234 = vmatprep.subr.mxu0 0.0
        %2235 = vmatpush2.msra.mxu0 0.0
        %2236 = vmatprep.mubr.f32.mxu0 0.0
        %2237 = vmatmul.mubr.f32.gmra.mxu0 %v2170
        %v2238 = vpop.f32.mrf.mxu0
        %v2239 = vadd.f32 0.0, %v2238
        %v2240 = vpop.f32.mrf.mxu0
        %2241 = vdwg.mxu0
        %v2242 = vadd.f32 %v2161, %v2239
        %s2243 = scalar_lea.vmem %s10, 96
        %v2244 = vld [vmem:[%s2243] sm:$0xff]
        %v2245 = vld [vmem:[%s2243 + $0x8] sm:$0xff]
        %v2246 = vld [vmem:[%s2243 + $0x10] sm:$0xff]
        %v2247 = vld [vmem:[%s2243 + $0x18] sm:$0xff]
        %v2248 = vrot.slane %v2008, 3
        %v2249 = vsel %vm528, %v2248, 0
        %2251 = vmatprep.subr.mxu0 0.0
        %2252 = vmatpush1.msra.mxu0 0.0
        %2253 = vmatprep.subr.mxu0 0.0
        %2254 = vmatpush1.msra.mxu0 0.0
        %2255 = vmatprep.subr.mxu0 0.0
        %2256 = vmatpush1.msra.mxu0 0.0
        %2257 = vmatprep.subr.mxu0 0.0
        %2258 = vmatpush1.msra.mxu0 0.0
        %2259 = vmatprep.subr.mxu0 0.0
        %2260 = vmatpush1.msra.mxu0 0.0
        %2261 = vmatprep.subr.mxu0 0.0
        %2262 = vmatpush1.msra.mxu0 0.0
        %2263 = vmatprep.subr.mxu0 0.0
        %2264 = vmatpush1.msra.mxu0 0.0
        %2265 = vmatprep.subr.mxu0 0.0
        %2266 = vmatpush1.msra.mxu0 0.0
        %2267 = vmatprep.subr.mxu0 0.0
        %2268 = vmatpush1.msra.mxu0 0.0
        %2269 = vmatprep.subr.mxu0 0.0
        %2270 = vmatpush1.msra.mxu0 0.0
        %2271 = vmatprep.subr.mxu0 0.0
        %2272 = vmatpush1.msra.mxu0 0.0
        %2273 = vmatprep.subr.mxu0 0.0
        %2274 = vmatpush1.msra.mxu0 0.0
        %2275 = vmatprep.subr.mxu0 0.0
        %2276 = vmatpush1.msra.mxu0 %v2247
        %2277 = vmatprep.subr.mxu0 0.0
        %2278 = vmatpush1.msra.mxu0 %v2246
        %2279 = vmatprep.subr.mxu0 0.0
        %2280 = vmatpush1.msra.mxu0 %v2245
        %2281 = vmatprep.subr.mxu0 0.0
        %2282 = vmatpush1.msra.mxu0 %v2244
        %2283 = vmatprep.subr.mxu0 0.0
        %2284 = vmatpush2.msra.mxu0 0.0
        %2285 = vmatprep.subr.mxu0 0.0
        %2286 = vmatpush2.msra.mxu0 0.0
        %2287 = vmatprep.subr.mxu0 0.0
        %2288 = vmatpush2.msra.mxu0 0.0
        %2289 = vmatprep.subr.mxu0 0.0
        %2290 = vmatpush2.msra.mxu0 0.0
        %2291 = vmatprep.subr.mxu0 0.0
        %2292 = vmatpush2.msra.mxu0 0.0
        %2293 = vmatprep.subr.mxu0 0.0
        %2294 = vmatpush2.msra.mxu0 0.0
        %2295 = vmatprep.subr.mxu0 0.0
        %2296 = vmatpush2.msra.mxu0 0.0
        %2297 = vmatprep.subr.mxu0 0.0
        %2298 = vmatpush2.msra.mxu0 0.0
        %2299 = vmatprep.subr.mxu0 0.0
        %2300 = vmatpush2.msra.mxu0 0.0
        %2301 = vmatprep.subr.mxu0 0.0
        %2302 = vmatpush2.msra.mxu0 0.0
        %2303 = vmatprep.subr.mxu0 0.0
        %2304 = vmatpush2.msra.mxu0 0.0
        %2305 = vmatprep.subr.mxu0 0.0
        %2306 = vmatpush2.msra.mxu0 0.0
        %2307 = vmatprep.subr.mxu0 0.0
        %2308 = vmatpush2.msra.mxu0 0.0
        %2309 = vmatprep.subr.mxu0 0.0
        %2310 = vmatpush2.msra.mxu0 0.0
        %2311 = vmatprep.subr.mxu0 0.0
        %2312 = vmatpush2.msra.mxu0 0.0
        %2313 = vmatprep.subr.mxu0 0.0
        %2314 = vmatpush2.msra.mxu0 0.0
        %2315 = vmatprep.mubr.f32.mxu0 0.0
        %2316 = vmatmul.mubr.f32.gmra.mxu0 %v2249
        %v2317 = vpop.f32.mrf.mxu0
        %v2318 = vadd.f32 0.0, %v2317
        %v2319 = vpop.f32.mrf.mxu0
        %2320 = vdwg.mxu0
        %v2321 = vadd.f32 %v2242, %v2318
        %v2322 = vld [vmem:[%s11] sm:$0x1]
        %v2323 = vadd.f32 %v2321, %v2322
        %v2324 = vld [vmem:[%s521] sm:$0x1]
        %v2325 = vmul.f32 %v2323, 0.5
        %v2326 = vmul.f32 %v2325, 1.442695
        %v2327 = vpow.pop %v2326
        %v2330 = vunpack.c.l.s4 1966171168
        %v2331 = vunpack.c.0.s8 %v2330
        %v2332 = vlaneseq
        %v2333 = vshrl.u32 %v2332, 7
        %v2334 = vsub.s32 %v2331, %v2333
        %v2335 = vrot.slane %v2327, %v2334
        %v2337 = vunpack.c.l.s4 1966171168
        %v2338 = vunpack.c.0.s8 %v2337
        %v2339 = vlaneseq
        %v2340 = vshrl.u32 %v2339, 7
        %v2341 = vsub.s32 %v2338, %v2340
        %v2342 = vrot.slane %v2335, %v2341
        %2343 = vrot.lane.b32.xlu0 %v2342, 112
        %v2344 = vpop.permute.xlu0 %2343
        %v2346 = vmul.f32 %v2324, %v2344
        %v2347 = vadd.f32 %v2323, %v2346
        %vm2348 = vcmask 122880
        %2349 = vst.msk [vmem:[%s507] sm:$0x1] %vm2348, %v2323
        %2351 = vrot.lane.b32.xlu0 %v2323, 112
        %v2352 = vpop.permute.xlu0 %2351
        %2354 = vst.msk [vmem:[%s513] sm:$0x1] %vm2348, %v2352
        %2355 = vst.msk [vmem:[%s501] sm:$0x1] %vm2348, %v2347
        %s2356 = sand.u32 %s324, 1
        %s2357 = scalar_lea.sflag [#allocation3], %s2356
        %s2358 = sand.u32 %s324, 1
        %s2359 = scalar_lea.vmem [#allocation2], %s2358
        %s2360 = sand.u32 %s33, 1
        %s2361 = scalar_lea.sflag [#allocation5], %s2360
        %s2362 = sand.u32 %s350, 1
        %s2363 = scalar_lea.vmem [#allocation4], %s2362
        %s2364 = sand.u32 %s33, 1
        %s2365 = scalar_lea.sflag [#allocation5], %s2364
        %s2366 = sand.u32 %s376, 1
        %s2367 = scalar_lea.vmem [#allocation6], %s2366
        // Predicated region
        $region73: #{encoder_forward.1} parent=71 // pred_check
          %p2368 = pneg %p334
        $region74: #{encoder_forward.1} parent=71 // pred_check_branch
          %2370 = sbr.rel (%p2368) target = $region76
        $region75: #{encoder_forward.1} parent=71 // pred_region
          %s2372 = ssub.s32 16, 16
          %2373 = vsyncadd %s2357, %s2372
          %s2374 = smul.addr %s33, 16
          %s2375 = scalar_lea.hbm %s13, %s2374
          %s2377 = sshll.u32 %s2359, 4
          %s2378 = int_to_ptr.vmem [resolvable:$true] %s2377
          %2380 = dma.vmem_to_hbm [thread:$0]  %s2378, 16, %s2375, %s2357
        $region76: #{encoder_forward.1} parent=71 // pred_fallthru
          _
        // Predicated region
        $region77: #{encoder_forward.1} parent=71 // pred_check
          %p2381 = pneg %p360
        $region78: #{encoder_forward.1} parent=71 // pred_check_branch
          %2383 = sbr.rel (%p2381) target = $region80
        $region79: #{encoder_forward.1} parent=71 // pred_region
          %s2385 = ssub.s32 16, 16
          %2386 = vsyncadd %s2361, %s2385
          %s2387 = smul.addr %s33, 16
          %s2388 = scalar_lea.hbm %s14, %s2387
          %s2390 = sshll.u32 %s2363, 4
          %s2391 = int_to_ptr.vmem [resolvable:$true] %s2390
          %2393 = dma.vmem_to_hbm [thread:$0]  %s2391, 16, %s2388, %s2361
        $region80: #{encoder_forward.1} parent=71 // pred_fallthru
          _
        // Predicated region
        $region81: #{encoder_forward.1} parent=71 // pred_check
          %p2394 = pneg %p386
        $region82: #{encoder_forward.1} parent=71 // pred_check_branch
          %2396 = sbr.rel (%p2394) target = $region84
        $region83: #{encoder_forward.1} parent=71 // pred_region
          %s2398 = ssub.s32 16, 16
          %2399 = vsyncadd %s2365, %s2398
          %s2400 = smul.addr %s33, 16
          %s2401 = scalar_lea.hbm %s15, %s2400
          %s2403 = sshll.u32 %s2367, 4
          %s2404 = int_to_ptr.vmem [resolvable:$true] %s2403
          %2406 = dma.vmem_to_hbm [thread:$0]  %s2404, 16, %s2401, %s2365
        $region84: #{encoder_forward.1} parent=71 // pred_fallthru
          _
      $region72: #{encoder_forward.1} parent=5 // pred_fallthru
        _
      %p2407 = scmp.le.s32.totalorder 2, %s28
      // Predicated region
      $region85: #{encoder_forward.1} parent=5 // pred_check
        %p2408 = pneg %p2407
      $region86: #{encoder_forward.1} parent=5 // pred_check_branch
        %2410 = sbr.rel (%p2408) target = $region88
      $region87: #{encoder_forward.1} parent=5 // pred_region
        %s2411 = ssub.s32 %s28, 2
        // Predicated region
        $region89: #{encoder_forward.1} parent=87 // pred_check
          %p2412 = pneg %p340
        $region90: #{encoder_forward.1} parent=87 // pred_check_branch
          %2414 = sbr.rel (%p2412) target = $region92
        $region91: #{encoder_forward.1} parent=87 // pred_region
          %s2415 = sand.u32 %s325, 1
          %s2416 = scalar_lea.sflag [#allocation3], %s2415
          %s2417 = sand.u32 %s325, 1
          %s2418 = scalar_lea.vmem [#allocation2], %s2417
          %2419 = dma.done %s2416, 16
        $region92: #{encoder_forward.1} parent=87 // pred_fallthru
          _
        // Predicated region
        $region93: #{encoder_forward.1} parent=87 // pred_check
          %p2420 = pneg %p366
        $region94: #{encoder_forward.1} parent=87 // pred_check_branch
          %2422 = sbr.rel (%p2420) target = $region96
        $region95: #{encoder_forward.1} parent=87 // pred_region
          %s2423 = sand.u32 %s34, 1
          %s2424 = scalar_lea.sflag [#allocation5], %s2423
          %s2425 = sand.u32 %s351, 1
          %s2426 = scalar_lea.vmem [#allocation4], %s2425
          %2427 = dma.done %s2424, 16
        $region96: #{encoder_forward.1} parent=87 // pred_fallthru
          _
        // Predicated region
        $region97: #{encoder_forward.1} parent=87 // pred_check
          %p2428 = pneg %p392
        $region98: #{encoder_forward.1} parent=87 // pred_check_branch
          %2430 = sbr.rel (%p2428) target = $region100
        $region99: #{encoder_forward.1} parent=87 // pred_region
          %s2431 = sand.u32 %s34, 1
          %s2432 = scalar_lea.sflag [#allocation5], %s2431
          %s2433 = sand.u32 %s377, 1
          %s2434 = scalar_lea.vmem [#allocation6], %s2433
          %2435 = dma.done %s2432, 16
        $region100: #{encoder_forward.1} parent=87 // pred_fallthru
          _
      $region88: #{encoder_forward.1} parent=5 // pred_fallthru
        _
    $region6: #{encoder_forward.1} parent=1 // loop_footer
      %s32 = sadd.s32 1, %s28
    $region7: #{encoder_forward.1} parent=1 // loop_footer_branch
      %27 = sbr.rel target = $region3
    $region8: #{encoder_forward.1} parent=1 // loop_exit
      _
    %2436 = vsyncpa [#allocation3], 1
    %s2437 = scalar_lea.sflag [#allocation3], 1
    %2438 = vsyncpa %s2437, 1
    %2439 = vsyncpa [#allocation5], 1
    %s2440 = scalar_lea.sflag [#allocation5], 1
    %2441 = vsyncpa %s2440, 1

</llo_original>
